<compile_context>
chip_gen: v6e
topology: v6e:2x2x1
jax: 0.10.0
libtpu: 0.0.40
codegen_flags: <defaults>
</compile_context>

<pallas_src>
import jax
import jax.numpy as jnp
import numpy as np
from jax import lax
from jax.experimental import pallas as pl
from jax.experimental.pallas import tpu as pltpu

NUM_GROUPS = 32
EPS = 1e-5


def attn_block(x_nchw, gamma, beta, wq, bq, wk, bk, wv, bv, wp, bp):
    """Forward pass of AttnBlock (condition=None path).

    x_nchw      : (B, C, H, W) float32
    gamma, beta : (C,) GroupNorm affine parameters
    wq/wk/wv/wp : (C_out, C_in) 1x1-conv weights in native PyTorch layout
    bq/bk/bv/bp : (C,)
    """
    B, C, H, W = x_nchw.shape
    HW = H * W
    G = NUM_GROUPS
    assert C % G == 0, "in_channels must be divisible by 32 (GroupNorm groups)"
    gs = C // G
    scale = float(C) ** -0.5
    inv_count = 1.0 / float(gs * HW)

    # Channels-as-sublanes layout; reshape is free (contiguous), no HBM transpose pass.
    x = x_nchw.reshape(B, C, HW)

    # One-time weight prep: fold the attention scale into wq/bq, fuse QKV weights,
    # bf16 operands for the MXU (f32 accumulation inside the kernel).
    wqkv = jnp.concatenate([wq * scale, wk, wv], axis=0).astype(jnp.bfloat16)   # (3C, C)
    bqkv = jnp.concatenate([bq * scale, bk, bv], axis=0).reshape(3 * C, 1)
    bqkv = bqkv.astype(jnp.float32)                                             # (3C, 1)
    wp_bf = wp.astype(jnp.bfloat16)                                             # (C, C)
    bp_c = bp.reshape(C, 1).astype(jnp.float32)
    gamma_c = gamma.reshape(C, 1).astype(jnp.float32)
    beta_c = beta.reshape(C, 1).astype(jnp.float32)

    # Group one-hots (channel c belongs to group c // gs), both orientations so all
    # group reduce / broadcast steps are standard-orientation matmuls.
    grp = jnp.arange(C) // gs
    mg_cg = jax.nn.one_hot(grp, G, dtype=jnp.float32)                           # (C, G)
    mg_gc = mg_cg.T                                                             # (G, C)

    def fused_kernel(x_ref, mg_gc_ref, mg_cg_ref, gamma_ref, beta_ref,
                     wqkv_ref, bqkv_ref, wp_ref, bp_ref, o_ref):
        xb = x_ref[0]                                                   # (C, HW) f32

        # ---------------- GroupNorm: centered two-pass statistics ----------------
        sc = jnp.sum(xb, axis=1, keepdims=True)                         # (C, 1)
        mean_g = jnp.dot(mg_gc_ref[...], sc,
                         preferred_element_type=jnp.float32) * inv_count        # (G, 1)
        mean_c = jnp.dot(mg_cg_ref[...], mean_g,
                         preferred_element_type=jnp.float32)                    # (C, 1)
        xc = xb - mean_c                                                 # (C, HW)
        vs = jnp.sum(xc * xc, axis=1, keepdims=True)                     # (C, 1)
        var_g = jnp.dot(mg_gc_ref[...], vs,
                        preferred_element_type=jnp.float32) * inv_count         # (G, 1)
        inv_g = lax.rsqrt(var_g + EPS)
        inv_c = jnp.dot(mg_cg_ref[...], inv_g,
                        preferred_element_type=jnp.float32)                     # (C, 1)
        h = xc * inv_c * gamma_ref[...] + beta_ref[...]                  # (C, HW)

        # ---------------- fused QKV 1x1 projection (single MXU launch) ----------------
        qkv = jnp.dot(wqkv_ref[...], h.astype(jnp.bfloat16),
                      preferred_element_type=jnp.float32) + bqkv_ref[...]       # (3C, HW)
        q = qkv[:C].astype(jnp.bfloat16)          # sublane-aligned slices (C mult. of 8)
        k = qkv[C:2 * C].astype(jnp.bfloat16)
        v = qkv[2 * C:].astype(jnp.bfloat16)

        # ---------------- attention: plain stable softmax, all KV resident ----------------
        # scale already folded into wq; s[i, j] = sum_c q[c, i] * k[c, j]
        s = lax.dot_general(q, k, (((0,), (0,)), ((), ())),
                            preferred_element_type=jnp.float32)                 # (HW, HW)
        m = jnp.max(s, axis=-1, keepdims=True)
        p = jnp.exp(s - m)
        denom = jnp.sum(p, axis=-1, keepdims=True)
        p = p * pl.reciprocal(denom, approx=True)
        # o_attn[c, i] = sum_j v[c, j] * p[i, j]   -> directly in (C, HW) layout
        o_attn = lax.dot_general(v, p.astype(jnp.bfloat16),
                                 (((1,), (1,)), ((), ())),
                                 preferred_element_type=jnp.float32)            # (C, HW)

        # ---------------- proj_out + residual ----------------
        proj = jnp.dot(wp_ref[...], o_attn.astype(jnp.bfloat16),
                       preferred_element_type=jnp.float32) + bp_ref[...]        # (C, HW)
        o_ref[0] = proj + xb

    # Explicit VMEM budget (double-buffered I/O blocks + constants + large intermediates).
    f32b, bf16b = 4, 2
    io_bytes = 2 * (2 * C * HW * f32b)                        # x block + out block
    const_bytes = 2 * ((4 * C * C) * bf16b + (2 * G * C + 7 * C) * f32b)
    interm_bytes = 5 * C * HW * f32b + 2 * HW * HW * f32b     # h/qkv/o_attn + scores/probs
    vmem_limit = int(min(max(int((io_bytes + const_bytes + interm_bytes) * 1.5),
                             32 * 1024 * 1024),
                         64 * 1024 * 1024))

    out = pl.pallas_call(
        fused_kernel,
        out_shape=jax.ShapeDtypeStruct((B, C, HW), jnp.float32),
        grid_spec=pltpu.PrefetchScalarGridSpec(
            num_scalar_prefetch=0,
            grid=(B,),
            in_specs=[
                pl.BlockSpec((1, C, HW), lambda b: (b, 0, 0)),
                pl.BlockSpec((G, C), lambda b: (0, 0)),
                pl.BlockSpec((C, G), lambda b: (0, 0)),
                pl.BlockSpec((C, 1), lambda b: (0, 0)),
                pl.BlockSpec((C, 1), lambda b: (0, 0)),
                pl.BlockSpec((3 * C, C), lambda b: (0, 0)),
                pl.BlockSpec((3 * C, 1), lambda b: (0, 0)),
                pl.BlockSpec((C, C), lambda b: (0, 0)),
                pl.BlockSpec((C, 1), lambda b: (0, 0)),
            ],
            out_specs=pl.BlockSpec((1, C, HW), lambda b: (b, 0, 0)),
        ),
        compiler_params=pltpu.CompilerParams(
            dimension_semantics=("parallel",),
            vmem_limit_bytes=vmem_limit),
    )(x, mg_gc, mg_cg, gamma_c, beta_c, wqkv, bqkv, wp_bf, bp_c)

    return out.reshape(B, C, H, W)


def ref_attn_block(x, gamma, beta, wq, bq, wk, bk, wv, bv, wp, bp):
    """Pure-JAX f32 reference mirroring the PyTorch forward (condition=None)."""
    B, C, H, W = x.shape
    G = NUM_GROUPS
    xg = x.reshape(B, G, C // G, H, W)
    mean = xg.mean(axis=(2, 3, 4), keepdims=True)
    var = xg.var(axis=(2, 3, 4), keepdims=True)
    hn = ((xg - mean) / jnp.sqrt(var + EPS)).reshape(B, C, H, W)
    hn = hn * gamma.reshape(1, C, 1, 1) + beta.reshape(1, C, 1, 1)
    h2 = hn.reshape(B, C, H * W)                                    # (B, C, HW)
    q = jnp.einsum('oc,bcn->bon', wq, h2) + bq.reshape(1, C, 1)
    k = jnp.einsum('oc,bcn->bon', wk, h2) + bk.reshape(1, C, 1)
    v = jnp.einsum('oc,bcn->bon', wv, h2) + bv.reshape(1, C, 1)
    s = jnp.einsum('bcq,bck->bqk', q, k) * (C ** -0.5)
    p = jax.nn.softmax(s, axis=-1)
    o = jnp.einsum('bqk,bck->bcq', p, v)
    o = jnp.einsum('oc,bcq->boq', wp, o) + bp.reshape(1, C, 1)
    return o.reshape(B, C, H, W) + x


if __name__ == "__main__":
    B, C, H, W = 2, 64, 16, 16          # C must be divisible by 32 (GroupNorm groups)
    key = jax.random.PRNGKey(0)
    keys = jax.random.split(key, 11)

    x = jax.random.normal(keys[0], (B, C, H, W), dtype=jnp.float32)

    # GroupNorm affine params (C,); 1x1-conv weights in native PyTorch (C_out, C_in) layout.
    gamma = 1.0 + 0.1 * jax.random.normal(keys[1], (C,), dtype=jnp.float32)
    beta = 0.1 * jax.random.normal(keys[2], (C,), dtype=jnp.float32)
    wq = 0.1 * jax.random.normal(keys[3], (C, C), dtype=jnp.float32)
    bq = 0.1 * jax.random.normal(keys[4], (C,), dtype=jnp.float32)
    wk = 0.1 * jax.random.normal(keys[5], (C, C), dtype=jnp.float32)
    bk = 0.1 * jax.random.normal(keys[6], (C,), dtype=jnp.float32)
    wv = 0.1 * jax.random.normal(keys[7], (C, C), dtype=jnp.float32)
    bv = 0.1 * jax.random.normal(keys[8], (C,), dtype=jnp.float32)
    wp = 0.1 * jax.random.normal(keys[9], (C, C), dtype=jnp.float32)
    bp = 0.1 * jax.random.normal(keys[10], (C,), dtype=jnp.float32)

    out = attn_block(x, gamma, beta, wq, bq, wk, bk, wv, bv, wp, bp)
    out = jax.block_until_ready(out)

    ref = ref_attn_block(x, gamma, beta, wq, bq, wk, bk, wv, bv, wp, bp)
    ref = jax.block_until_ready(ref)

    # Tolerance accounts for bf16 MXU inputs (f32 accumulation) and the approx reciprocal
    # in the softmax denominator vs the all-f32 reference.
    np.testing.assert_allclose(np.asarray(out), np.asarray(ref), atol=2e-2, rtol=2e-2)
    print("KERNEL_OK")
</pallas_src>

<mosaic_0001>
module attributes {stable_mosaic.version = 11 : i64} {
  func.func @fused_kernel(%arg0: i32, %arg1: memref<1x64x256xf32, #tpu.memory_space<vmem>>, %arg2: memref<32x64xf32, #tpu.memory_space<vmem>>, %arg3: memref<64x32xf32, #tpu.memory_space<vmem>>, %arg4: memref<64x1xf32, #tpu.memory_space<vmem>>, %arg5: memref<64x1xf32, #tpu.memory_space<vmem>>, %arg6: memref<192x64xbf16, #tpu.memory_space<vmem>>, %arg7: memref<192x1xf32, #tpu.memory_space<vmem>>, %arg8: memref<64x64xbf16, #tpu.memory_space<vmem>>, %arg9: memref<64x1xf32, #tpu.memory_space<vmem>>, %arg10: memref<1x64x256xf32, #tpu.memory_space<vmem>>) attributes {dimension_semantics = [#tpu.dimension_semantics<parallel>], iteration_bounds = array<i64: 2>, scalar_prefetch = 0 : i64, scratch_operands = 0 : i64, tpu.core_type = #tpu.core_type<tc>, window_params = [{transform_indices = @transform_0, window_bounds = array<i64: 1, 64, 256>}, {pipeline_mode = #tpu.pipeline_mode<synchronous>, transform_indices = @transform_1, window_bounds = array<i64: 32, 64>}, {pipeline_mode = #tpu.pipeline_mode<synchronous>, transform_indices = @transform_2, window_bounds = array<i64: 64, 32>}, {pipeline_mode = #tpu.pipeline_mode<synchronous>, transform_indices = @transform_3, window_bounds = array<i64: 64, 1>}, {pipeline_mode = #tpu.pipeline_mode<synchronous>, transform_indices = @transform_4, window_bounds = array<i64: 64, 1>}, {pipeline_mode = #tpu.pipeline_mode<synchronous>, transform_indices = @transform_5, window_bounds = array<i64: 192, 64>}, {pipeline_mode = #tpu.pipeline_mode<synchronous>, transform_indices = @transform_6, window_bounds = array<i64: 192, 1>}, {pipeline_mode = #tpu.pipeline_mode<synchronous>, transform_indices = @transform_7, window_bounds = array<i64: 64, 64>}, {pipeline_mode = #tpu.pipeline_mode<synchronous>, transform_indices = @transform_8, window_bounds = array<i64: 64, 1>}, {transform_indices = @transform_9, window_bounds = array<i64: 1, 64, 256>}]} {
    %c0 = arith.constant 0 : index
    %c0_0 = arith.constant 0 : index
    %c0_1 = arith.constant 0 : index
    %0 = vector.load %arg1[%c0, %c0_0, %c0_1] : memref<1x64x256xf32, #tpu.memory_space<vmem>>, vector<1x64x256xf32>
    %1 = vector.shape_cast %0 : vector<1x64x256xf32> to vector<64x256xf32>
    %cst = arith.constant dense<0.000000e+00> : vector<64xf32>
    %2 = vector.multi_reduction <add>, %1, %cst [1] : vector<64x256xf32> to vector<64xf32>
    %3 = vector.shape_cast %2 : vector<64xf32> to vector<64x1xf32>
    %c0_2 = arith.constant 0 : index
    %c0_3 = arith.constant 0 : index
    %4 = vector.load %arg2[%c0_2, %c0_3] : memref<32x64xf32, #tpu.memory_space<vmem>>, vector<32x64xf32>
    %cst_4 = arith.constant dense<0.000000e+00> : vector<32x1xf32>
    %5 = tpu.matmul %4, %3, %cst_4 {dimension_numbers = #tpu.dot_dimension_numbers<[1], [0], [0], [1], [0, 0, 1, 1], [], []>} : vector<32x64xf32>, vector<64x1xf32>, vector<32x1xf32> -> vector<32x1xf32>
    %cst_5 = arith.constant 0.001953125 : f32
    %6 = vector.broadcast %cst_5 : f32 to vector<32x1xf32>
    %7 = arith.mulf %5, %6 : vector<32x1xf32>
    %c0_6 = arith.constant 0 : index
    %c0_7 = arith.constant 0 : index
    %8 = vector.load %arg3[%c0_6, %c0_7] : memref<64x32xf32, #tpu.memory_space<vmem>>, vector<64x32xf32>
    %cst_8 = arith.constant dense<0.000000e+00> : vector<64x1xf32>
    %9 = tpu.matmul %8, %7, %cst_8 {dimension_numbers = #tpu.dot_dimension_numbers<[1], [0], [0], [1], [0, 0, 1, 1], [], []>} : vector<64x32xf32>, vector<32x1xf32>, vector<64x1xf32> -> vector<64x1xf32>
    %10 = vector.broadcast %9 : vector<64x1xf32> to vector<64x256xf32>
    %11 = arith.subf %1, %10 : vector<64x256xf32>
    %12 = arith.mulf %11, %11 : vector<64x256xf32>
    %cst_9 = arith.constant dense<0.000000e+00> : vector<64xf32>
    %13 = vector.multi_reduction <add>, %12, %cst_9 [1] : vector<64x256xf32> to vector<64xf32>
    %14 = vector.shape_cast %13 : vector<64xf32> to vector<64x1xf32>
    %c0_10 = arith.constant 0 : index
    %c0_11 = arith.constant 0 : index
    %15 = vector.load %arg2[%c0_10, %c0_11] : memref<32x64xf32, #tpu.memory_space<vmem>>, vector<32x64xf32>
    %cst_12 = arith.constant dense<0.000000e+00> : vector<32x1xf32>
    %16 = tpu.matmul %15, %14, %cst_12 {dimension_numbers = #tpu.dot_dimension_numbers<[1], [0], [0], [1], [0, 0, 1, 1], [], []>} : vector<32x64xf32>, vector<64x1xf32>, vector<32x1xf32> -> vector<32x1xf32>
    %cst_13 = arith.constant 0.001953125 : f32
    %17 = vector.broadcast %cst_13 : f32 to vector<32x1xf32>
    %18 = arith.mulf %16, %17 : vector<32x1xf32>
    %cst_14 = arith.constant 9.99999974E-6 : f32
    %19 = vector.broadcast %cst_14 : f32 to vector<32x1xf32>
    %20 = arith.addf %18, %19 : vector<32x1xf32>
    %21 = math.rsqrt %20 : vector<32x1xf32>
    %c0_15 = arith.constant 0 : index
    %c0_16 = arith.constant 0 : index
    %22 = vector.load %arg3[%c0_15, %c0_16] : memref<64x32xf32, #tpu.memory_space<vmem>>, vector<64x32xf32>
    %cst_17 = arith.constant dense<0.000000e+00> : vector<64x1xf32>
    %23 = tpu.matmul %22, %21, %cst_17 {dimension_numbers = #tpu.dot_dimension_numbers<[1], [0], [0], [1], [0, 0, 1, 1], [], []>} : vector<64x32xf32>, vector<32x1xf32>, vector<64x1xf32> -> vector<64x1xf32>
    %24 = vector.broadcast %23 : vector<64x1xf32> to vector<64x256xf32>
    %25 = arith.mulf %11, %24 : vector<64x256xf32>
    %c0_18 = arith.constant 0 : index
    %c0_19 = arith.constant 0 : index
    %26 = vector.load %arg4[%c0_18, %c0_19] : memref<64x1xf32, #tpu.memory_space<vmem>>, vector<64x1xf32>
    %27 = vector.broadcast %26 : vector<64x1xf32> to vector<64x256xf32>
    %28 = arith.mulf %25, %27 : vector<64x256xf32>
    %c0_20 = arith.constant 0 : index
    %c0_21 = arith.constant 0 : index
    %29 = vector.load %arg5[%c0_20, %c0_21] : memref<64x1xf32, #tpu.memory_space<vmem>>, vector<64x1xf32>
    %30 = vector.broadcast %29 : vector<64x1xf32> to vector<64x256xf32>
    %31 = arith.addf %28, %30 : vector<64x256xf32>
    %c0_22 = arith.constant 0 : index
    %c0_23 = arith.constant 0 : index
    %32 = vector.load %arg6[%c0_22, %c0_23] : memref<192x64xbf16, #tpu.memory_space<vmem>>, vector<192x64xbf16>
    %33 = arith.truncf %31 : vector<64x256xf32> to vector<64x256xbf16>
    %cst_24 = arith.constant dense<0.000000e+00> : vector<192x256xf32>
    %34 = tpu.matmul %32, %33, %cst_24 {dimension_numbers = #tpu.dot_dimension_numbers<[1], [0], [0], [1], [0, 0, 1, 1], [], []>} : vector<192x64xbf16>, vector<64x256xbf16>, vector<192x256xf32> -> vector<192x256xf32>
    %c0_25 = arith.constant 0 : index
    %c0_26 = arith.constant 0 : index
    %35 = vector.load %arg7[%c0_25, %c0_26] : memref<192x1xf32, #tpu.memory_space<vmem>>, vector<192x1xf32>
    %36 = vector.broadcast %35 : vector<192x1xf32> to vector<192x256xf32>
    %37 = arith.addf %34, %36 : vector<192x256xf32>
    %38 = vector.extract_strided_slice %37 {offsets = [0, 0], sizes = [64, 256], strides = [1, 1]} : vector<192x256xf32> to vector<64x256xf32>
    %39 = arith.truncf %38 : vector<64x256xf32> to vector<64x256xbf16>
    %40 = vector.extract_strided_slice %37 {offsets = [64, 0], sizes = [64, 256], strides = [1, 1]} : vector<192x256xf32> to vector<64x256xf32>
    %41 = arith.truncf %40 : vector<64x256xf32> to vector<64x256xbf16>
    %42 = vector.extract_strided_slice %37 {offsets = [128, 0], sizes = [64, 256], strides = [1, 1]} : vector<192x256xf32> to vector<64x256xf32>
    %43 = arith.truncf %42 : vector<64x256xf32> to vector<64x256xbf16>
    %cst_27 = arith.constant dense<0.000000e+00> : vector<256x256xf32>
    %44 = tpu.matmul %39, %41, %cst_27 {dimension_numbers = #tpu.dot_dimension_numbers<[0], [0], [1], [1], [0, 1, 1, 1], [], []>} : vector<64x256xbf16>, vector<64x256xbf16>, vector<256x256xf32> -> vector<256x256xf32>
    %cst_28 = arith.constant dense<0xFF800000> : vector<256xf32>
    %45 = vector.multi_reduction <maximumf>, %44, %cst_28 [1] : vector<256x256xf32> to vector<256xf32>
    %46 = vector.shape_cast %45 : vector<256xf32> to vector<256x1xf32>
    %47 = vector.broadcast %46 : vector<256x1xf32> to vector<256x256xf32>
    %48 = arith.subf %44, %47 : vector<256x256xf32>
    %49 = math.exp %48 : vector<256x256xf32>
    %cst_29 = arith.constant dense<0.000000e+00> : vector<256xf32>
    %50 = vector.multi_reduction <add>, %49, %cst_29 [1] : vector<256x256xf32> to vector<256xf32>
    %51 = vector.shape_cast %50 : vector<256xf32> to vector<256x1xf32>
    %52 = tpu.reciprocal %51 {approx = true} : vector<256x1xf32> -> vector<256x1xf32>
    %53 = vector.broadcast %52 : vector<256x1xf32> to vector<256x256xf32>
    %54 = arith.mulf %49, %53 : vector<256x256xf32>
    %55 = arith.truncf %54 : vector<256x256xf32> to vector<256x256xbf16>
    %cst_30 = arith.constant dense<0.000000e+00> : vector<64x256xf32>
    %56 = tpu.matmul %43, %55, %cst_30 {dimension_numbers = #tpu.dot_dimension_numbers<[1], [1], [0], [0], [0, 0, 1, 0], [], []>} : vector<64x256xbf16>, vector<256x256xbf16>, vector<64x256xf32> -> vector<64x256xf32>
    %c0_31 = arith.constant 0 : index
    %c0_32 = arith.constant 0 : index
    %57 = vector.load %arg8[%c0_31, %c0_32] : memref<64x64xbf16, #tpu.memory_space<vmem>>, vector<64x64xbf16>
    %58 = arith.truncf %56 : vector<64x256xf32> to vector<64x256xbf16>
    %cst_33 = arith.constant dense<0.000000e+00> : vector<64x256xf32>
    %59 = tpu.matmul %57, %58, %cst_33 {dimension_numbers = #tpu.dot_dimension_numbers<[1], [0], [0], [1], [0, 0, 1, 1], [], []>} : vector<64x64xbf16>, vector<64x256xbf16>, vector<64x256xf32> -> vector<64x256xf32>
    %c0_34 = arith.constant 0 : index
    %c0_35 = arith.constant 0 : index
    %60 = vector.load %arg9[%c0_34, %c0_35] : memref<64x1xf32, #tpu.memory_space<vmem>>, vector<64x1xf32>
    %61 = vector.broadcast %60 : vector<64x1xf32> to vector<64x256xf32>
    %62 = arith.addf %59, %61 : vector<64x256xf32>
    %63 = arith.addf %62, %1 : vector<64x256xf32>
    %c0_36 = arith.constant 0 : index
    %c0_37 = arith.constant 0 : index
    %c0_38 = arith.constant 0 : index
    %64 = vector.load %arg10[%c0_36, %c0_37, %c0_38] : memref<1x64x256xf32, #tpu.memory_space<vmem>>, vector<1x64x256xf32>
    %65 = vector.shape_cast %64 : vector<1x64x256xf32> to vector<64x256xf32>
    %66 = vector.shape_cast %63 : vector<64x256xf32> to vector<1x64x256xf32>
    tpu.vector_store %arg10[%c0_36, %c0_37, %c0_38], %66 {strides = array<i32>} : memref<1x64x256xf32, #tpu.memory_space<vmem>>, vector<1x64x256xf32>,
    return
  }
  func.func @transform_0(%arg0: i32) -> (i32, i32, i32) {
    %c0_i32 = arith.constant 0 : i32
    %c0_i32_0 = arith.constant 0 : i32
    %c0_i32_1 = arith.constant 0 : i32
    return %arg0, %c0_i32, %c0_i32_0 : i32, i32, i32
  }
  func.func @transform_1(%arg0: i32) -> (i32, i32) {
    %c0_i32 = arith.constant 0 : i32
    %c0_i32_0 = arith.constant 0 : i32
    %c0_i32_1 = arith.constant 0 : i32
    return %c0_i32, %c0_i32_0 : i32, i32
  }
  func.func @transform_2(%arg0: i32) -> (i32, i32) {
    %c0_i32 = arith.constant 0 : i32
    %c0_i32_0 = arith.constant 0 : i32
    %c0_i32_1 = arith.constant 0 : i32
    return %c0_i32, %c0_i32_0 : i32, i32
  }
  func.func @transform_3(%arg0: i32) -> (i32, i32) {
    %c0_i32 = arith.constant 0 : i32
    %c0_i32_0 = arith.constant 0 : i32
    %c0_i32_1 = arith.constant 0 : i32
    return %c0_i32, %c0_i32_0 : i32, i32
  }
  func.func @transform_4(%arg0: i32) -> (i32, i32) {
    %c0_i32 = arith.constant 0 : i32
    %c0_i32_0 = arith.constant 0 : i32
    %c0_i32_1 = arith.constant 0 : i32
    return %c0_i32, %c0_i32_0 : i32, i32
  }
  func.func @transform_5(%arg0: i32) -> (i32, i32) {
    %c0_i32 = arith.constant 0 : i32
    %c0_i32_0 = arith.constant 0 : i32
    %c0_i32_1 = arith.constant 0 : i32
    return %c0_i32, %c0_i32_0 : i32, i32
  }
  func.func @transform_6(%arg0: i32) -> (i32, i32) {
    %c0_i32 = arith.constant 0 : i32
    %c0_i32_0 = arith.constant 0 : i32
    %c0_i32_1 = arith.constant 0 : i32
    return %c0_i32, %c0_i32_0 : i32, i32
  }
  func.func @transform_7(%arg0: i32) -> (i32, i32) {
    %c0_i32 = arith.constant 0 : i32
    %c0_i32_0 = arith.constant 0 : i32
    %c0_i32_1 = arith.constant 0 : i32
    return %c0_i32, %c0_i32_0 : i32, i32
  }
  func.func @transform_8(%arg0: i32) -> (i32, i32) {
    %c0_i32 = arith.constant 0 : i32
    %c0_i32_0 = arith.constant 0 : i32
    %c0_i32_1 = arith.constant 0 : i32
    return %c0_i32, %c0_i32_0 : i32, i32
  }
  func.func @transform_9(%arg0: i32) -> (i32, i32, i32) {
    %c0_i32 = arith.constant 0 : i32
    %c0_i32_0 = arith.constant 0 : i32
    %c0_i32_1 = arith.constant 0 : i32
    return %arg0, %c0_i32, %c0_i32_0 : i32, i32, i32
  }
}

</mosaic_0001>

<llo_original>
// kernel: tpu_custom_call.1
$region0: #{tpu_custom_call.1}
  #allocation0 [shape = 'u32[]', space=smem, size = 0x4, offset = 0x4, fixed_abs, tag = 'smem constant byte address 0x4 - core index']
  #allocation1 [shape = 'u32[144,128]{1,0:T(1,128)}', space=vmem, size = 0x12000, scoped, tag = 'internal scratch']
  %s0 = inlined_call_operand.vmem [shape: f32[2,64,256], index: 0, kind: input, shape index: {}]
  %s1 = inlined_call_operand.vmem [shape: f32[32,64], index: 1, kind: input, shape index: {}]
  %s2 = inlined_call_operand.vmem [shape: f32[64,32], index: 2, kind: input, shape index: {}]
  %s3 = inlined_call_operand.vmem [shape: f32[64,1], index: 3, kind: input, shape index: {}]
  %s4 = inlined_call_operand.vmem [shape: f32[64,1], index: 4, kind: input, shape index: {}]
  %s5 = inlined_call_operand.vmem [shape: bf16[192,64], index: 5, kind: input, shape index: {}]
  %s6 = inlined_call_operand.vmem [shape: f32[192,1], index: 6, kind: input, shape index: {}]
  %s7 = inlined_call_operand.vmem [shape: bf16[64,64], index: 7, kind: input, shape index: {}]
  %s8 = inlined_call_operand.vmem [shape: f32[64,1], index: 8, kind: input, shape index: {}]
  %s9 = inlined_call_operand.hbm [shape: f32[2,64,256], index: 9, kind: output, shape index: {}]
  %s10 = sld [smem:[#allocation0]]
  $region69: #{tpu_custom_call.1} parent=0
    _
  %s12 = ssub.s32 1, %s10
  %s13 = scalar_select 0, %s12, %s10
  $region1: #{tpu_custom_call.1} parent=0
    #allocation2 [shape = 'u8[131072]{0}', space=vmem, size = 0x20000, scoped, tag = 'output window, operand 0']
    #allocation3 [shape = 's32[2]{0}', space=sflag, size = 0x8, scoped, tag = 'scoped memory for tpu_custom_call.1']
    %14 = vsyncpa [#allocation3], 0
    %s15 = scalar_lea.sflag [#allocation3], 1
    %16 = vsyncpa %s15, 0
    loop: start=0, step=1, limit=4
    $region2: #{tpu_custom_call.1} parent=1 // loop_pre_header
      _
    $region3: #{tpu_custom_call.1} parent=1 // loop_header
      %s18 = sphi 0, %s22
      %p19 = scmp.ge.s32.totalorder %s18, 4
      %s28 = sphi 0, %s30
      %s31 = sphi 0, %s28
      %s32 = sphi 0, %s31
      %s48 = sphi 0, %s32
      %s52 = sphi 0, %s52
      %s54 = sphi 0, %s52
      %s55 = sphi 0, %s54
      %s69 = sphi 0, %s55
      %s73 = sphi 0, %s73
      %s75 = sphi 0, %s73
      %s76 = sphi 0, %s75
      %s90 = sphi 0, %s76
      %s94 = sphi 0, %s94
      %s96 = sphi 0, %s94
      %s97 = sphi 0, %s96
      %s111 = sphi 0, %s97
      %s115 = sphi 0, %s115
      %s117 = sphi 0, %s115
      %s118 = sphi 0, %s117
      %s132 = sphi 0, %s118
      %s136 = sphi 0, %s136
      %s138 = sphi 0, %s136
      %s139 = sphi 0, %s138
      %s153 = sphi 0, %s139
      %s157 = sphi 0, %s157
      %s159 = sphi 0, %s157
      %s160 = sphi 0, %s159
      %s174 = sphi 0, %s160
      %s178 = sphi 0, %s178
      %s180 = sphi 0, %s178
      %s181 = sphi 0, %s180
      %s195 = sphi 0, %s181
      %s199 = sphi 0, %s199
      %s201 = sphi 0, %s199
      %s202 = sphi 0, %s201
      %s216 = sphi 0, %s202
      %s222 = sphi 0, %s224
      %s225 = sphi 0, %s222
      %s226 = sphi 0, %s225
      %s242 = sphi 0, %s226
    $region4: #{tpu_custom_call.1} parent=1 // loop_header_branch
      %21 = sbr.rel (%p19) target = $region8
    $region5: #{tpu_custom_call.1} parent=1 // loop_body
      %s23 = ssub.s32 %s18, 1
      %s24 = ssub.s32 %s18, 2
      %s25 = sadd.s32 %s18, 1
      %s26 = ssub.s32 %s18, %s25
      %p27 = scmp.eq.s32.totalorder %s26, 0
      %s29 = sadd.s32 %s28, 1
      %s30 = scalar_select %p27, %s28, %s29
      %p33 = pneg %p27
      %p34 = scmp.eq.s32.totalorder %s18, 1
      %p35 = por %p33, %p34
      %p36 = scmp.ne.s32.totalorder %s28, %s31
      %p37 = scmp.eq.s32.totalorder %s18, 0
      %p38 = por %p36, %p37
      %p39 = scmp.ne.s32.totalorder %s28, %s31
      %p40 = scmp.eq.s32.totalorder %s23, 1
      %p41 = por %p39, %p40
      %p42 = scmp.ne.s32.totalorder %s31, %s32
      %p43 = scmp.eq.s32.totalorder %s23, 0
      %p44 = por %p42, %p43
      %p45 = scmp.ne.s32.totalorder %s31, %s32
      %p46 = scmp.eq.s32.totalorder %s24, 1
      %p47 = por %p45, %p46
      %p49 = scmp.ne.s32.totalorder %s32, %s48
      %p50 = scmp.eq.s32.totalorder %s24, 0
      %p51 = por %p49, %p50
      %s53 = sadd.s32 %s52, 1
      %p56 = scmp.eq.s32.totalorder %s18, 1
      %p57 = scmp.ne.s32.totalorder %s52, %s54
      %p58 = scmp.eq.s32.totalorder %s18, 0
      %p59 = por %p57, %p58
      %p60 = scmp.ne.s32.totalorder %s52, %s54
      %p61 = scmp.eq.s32.totalorder %s23, 1
      %p62 = por %p60, %p61
      %p63 = scmp.ne.s32.totalorder %s54, %s55
      %p64 = scmp.eq.s32.totalorder %s23, 0
      %p65 = por %p63, %p64
      %p66 = scmp.ne.s32.totalorder %s54, %s55
      %p67 = scmp.eq.s32.totalorder %s24, 1
      %p68 = por %p66, %p67
      %p70 = scmp.ne.s32.totalorder %s55, %s69
      %p71 = scmp.eq.s32.totalorder %s24, 0
      %p72 = por %p70, %p71
      %s74 = sadd.s32 %s73, 1
      %p77 = scmp.eq.s32.totalorder %s18, 1
      %p78 = scmp.ne.s32.totalorder %s73, %s75
      %p79 = scmp.eq.s32.totalorder %s18, 0
      %p80 = por %p78, %p79
      %p81 = scmp.ne.s32.totalorder %s73, %s75
      %p82 = scmp.eq.s32.totalorder %s23, 1
      %p83 = por %p81, %p82
      %p84 = scmp.ne.s32.totalorder %s75, %s76
      %p85 = scmp.eq.s32.totalorder %s23, 0
      %p86 = por %p84, %p85
      %p87 = scmp.ne.s32.totalorder %s75, %s76
      %p88 = scmp.eq.s32.totalorder %s24, 1
      %p89 = por %p87, %p88
      %p91 = scmp.ne.s32.totalorder %s76, %s90
      %p92 = scmp.eq.s32.totalorder %s24, 0
      %p93 = por %p91, %p92
      %s95 = sadd.s32 %s94, 1
      %p98 = scmp.eq.s32.totalorder %s18, 1
      %p99 = scmp.ne.s32.totalorder %s94, %s96
      %p100 = scmp.eq.s32.totalorder %s18, 0
      %p101 = por %p99, %p100
      %p102 = scmp.ne.s32.totalorder %s94, %s96
      %p103 = scmp.eq.s32.totalorder %s23, 1
      %p104 = por %p102, %p103
      %p105 = scmp.ne.s32.totalorder %s96, %s97
      %p106 = scmp.eq.s32.totalorder %s23, 0
      %p107 = por %p105, %p106
      %p108 = scmp.ne.s32.totalorder %s96, %s97
      %p109 = scmp.eq.s32.totalorder %s24, 1
      %p110 = por %p108, %p109
      %p112 = scmp.ne.s32.totalorder %s97, %s111
      %p113 = scmp.eq.s32.totalorder %s24, 0
      %p114 = por %p112, %p113
      %s116 = sadd.s32 %s115, 1
      %p119 = scmp.eq.s32.totalorder %s18, 1
      %p120 = scmp.ne.s32.totalorder %s115, %s117
      %p121 = scmp.eq.s32.totalorder %s18, 0
      %p122 = por %p120, %p121
      %p123 = scmp.ne.s32.totalorder %s115, %s117
      %p124 = scmp.eq.s32.totalorder %s23, 1
      %p125 = por %p123, %p124
      %p126 = scmp.ne.s32.totalorder %s117, %s118
      %p127 = scmp.eq.s32.totalorder %s23, 0
      %p128 = por %p126, %p127
      %p129 = scmp.ne.s32.totalorder %s117, %s118
      %p130 = scmp.eq.s32.totalorder %s24, 1
      %p131 = por %p129, %p130
      %p133 = scmp.ne.s32.totalorder %s118, %s132
      %p134 = scmp.eq.s32.totalorder %s24, 0
      %p135 = por %p133, %p134
      %s137 = sadd.s32 %s136, 1
      %p140 = scmp.eq.s32.totalorder %s18, 1
      %p141 = scmp.ne.s32.totalorder %s136, %s138
      %p142 = scmp.eq.s32.totalorder %s18, 0
      %p143 = por %p141, %p142
      %p144 = scmp.ne.s32.totalorder %s136, %s138
      %p145 = scmp.eq.s32.totalorder %s23, 1
      %p146 = por %p144, %p145
      %p147 = scmp.ne.s32.totalorder %s138, %s139
      %p148 = scmp.eq.s32.totalorder %s23, 0
      %p149 = por %p147, %p148
      %p150 = scmp.ne.s32.totalorder %s138, %s139
      %p151 = scmp.eq.s32.totalorder %s24, 1
      %p152 = por %p150, %p151
      %p154 = scmp.ne.s32.totalorder %s139, %s153
      %p155 = scmp.eq.s32.totalorder %s24, 0
      %p156 = por %p154, %p155
      %s158 = sadd.s32 %s157, 1
      %p161 = scmp.eq.s32.totalorder %s18, 1
      %p162 = scmp.ne.s32.totalorder %s157, %s159
      %p163 = scmp.eq.s32.totalorder %s18, 0
      %p164 = por %p162, %p163
      %p165 = scmp.ne.s32.totalorder %s157, %s159
      %p166 = scmp.eq.s32.totalorder %s23, 1
      %p167 = por %p165, %p166
      %p168 = scmp.ne.s32.totalorder %s159, %s160
      %p169 = scmp.eq.s32.totalorder %s23, 0
      %p170 = por %p168, %p169
      %p171 = scmp.ne.s32.totalorder %s159, %s160
      %p172 = scmp.eq.s32.totalorder %s24, 1
      %p173 = por %p171, %p172
      %p175 = scmp.ne.s32.totalorder %s160, %s174
      %p176 = scmp.eq.s32.totalorder %s24, 0
      %p177 = por %p175, %p176
      %s179 = sadd.s32 %s178, 1
      %p182 = scmp.eq.s32.totalorder %s18, 1
      %p183 = scmp.ne.s32.totalorder %s178, %s180
      %p184 = scmp.eq.s32.totalorder %s18, 0
      %p185 = por %p183, %p184
      %p186 = scmp.ne.s32.totalorder %s178, %s180
      %p187 = scmp.eq.s32.totalorder %s23, 1
      %p188 = por %p186, %p187
      %p189 = scmp.ne.s32.totalorder %s180, %s181
      %p190 = scmp.eq.s32.totalorder %s23, 0
      %p191 = por %p189, %p190
      %p192 = scmp.ne.s32.totalorder %s180, %s181
      %p193 = scmp.eq.s32.totalorder %s24, 1
      %p194 = por %p192, %p193
      %p196 = scmp.ne.s32.totalorder %s181, %s195
      %p197 = scmp.eq.s32.totalorder %s24, 0
      %p198 = por %p196, %p197
      %s200 = sadd.s32 %s199, 1
      %p203 = scmp.eq.s32.totalorder %s18, 1
      %p204 = scmp.ne.s32.totalorder %s199, %s201
      %p205 = scmp.eq.s32.totalorder %s18, 0
      %p206 = por %p204, %p205
      %p207 = scmp.ne.s32.totalorder %s199, %s201
      %p208 = scmp.eq.s32.totalorder %s23, 1
      %p209 = por %p207, %p208
      %p210 = scmp.ne.s32.totalorder %s201, %s202
      %p211 = scmp.eq.s32.totalorder %s23, 0
      %p212 = por %p210, %p211
      %p213 = scmp.ne.s32.totalorder %s201, %s202
      %p214 = scmp.eq.s32.totalorder %s24, 1
      %p215 = por %p213, %p214
      %p217 = scmp.ne.s32.totalorder %s202, %s216
      %p218 = scmp.eq.s32.totalorder %s24, 0
      %p219 = por %p217, %p218
      %s220 = ssub.s32 %s18, %s25
      %p221 = scmp.eq.s32.totalorder %s220, 0
      %s223 = sadd.s32 %s222, 1
      %s224 = scalar_select %p221, %s222, %s223
      %p227 = pneg %p221
      %p228 = scmp.eq.s32.totalorder %s18, 1
      %p229 = por %p227, %p228
      %p230 = scmp.ne.s32.totalorder %s222, %s225
      %p231 = scmp.eq.s32.totalorder %s18, 0
      %p232 = por %p230, %p231
      %p233 = scmp.ne.s32.totalorder %s222, %s225
      %p234 = scmp.eq.s32.totalorder %s23, 1
      %p235 = por %p233, %p234
      %p236 = scmp.ne.s32.totalorder %s225, %s226
      %p237 = scmp.eq.s32.totalorder %s23, 0
      %p238 = por %p236, %p237
      %p239 = scmp.ne.s32.totalorder %s225, %s226
      %p240 = scmp.eq.s32.totalorder %s24, 1
      %p241 = por %p239, %p240
      %p243 = scmp.ne.s32.totalorder %s226, %s242
      %p244 = scmp.eq.s32.totalorder %s24, 0
      %p245 = por %p243, %p244
      %p246 = scmp.le.s32.totalorder 1, %s18
      %p247 = scmp.lt.s32.totalorder %s18, 3
      %p248 = pnand %p246, %p247
      %p249 = pneg %p248
      // Predicated region
      $region9: #{tpu_custom_call.1} parent=5 // pred_check
        _
      $region10: #{tpu_custom_call.1} parent=5 // pred_check_branch
        %251 = sbr.rel (%p248) target = $region12
      $region11: #{tpu_custom_call.1} parent=5 // pred_region
        %s252 = ssub.s32 %s18, 1
        // Predicated region
        $region13: #{tpu_custom_call.1} parent=11 // pred_check
          %p253 = pneg %p65
        $region14: #{tpu_custom_call.1} parent=11 // pred_check_branch
          %255 = sbr.rel (%p253) target = $region16
        $region15: #{tpu_custom_call.1} parent=11 // pred_region
          _
        $region16: #{tpu_custom_call.1} parent=11 // pred_fallthru
          _
        // Predicated region
        $region17: #{tpu_custom_call.1} parent=11 // pred_check
          %p256 = pneg %p86
        $region18: #{tpu_custom_call.1} parent=11 // pred_check_branch
          %258 = sbr.rel (%p256) target = $region20
        $region19: #{tpu_custom_call.1} parent=11 // pred_region
          _
        $region20: #{tpu_custom_call.1} parent=11 // pred_fallthru
          _
        // Predicated region
        $region21: #{tpu_custom_call.1} parent=11 // pred_check
          %p259 = pneg %p107
        $region22: #{tpu_custom_call.1} parent=11 // pred_check_branch
          %261 = sbr.rel (%p259) target = $region24
        $region23: #{tpu_custom_call.1} parent=11 // pred_region
          _
        $region24: #{tpu_custom_call.1} parent=11 // pred_fallthru
          _
        // Predicated region
        $region25: #{tpu_custom_call.1} parent=11 // pred_check
          %p262 = pneg %p128
        $region26: #{tpu_custom_call.1} parent=11 // pred_check_branch
          %264 = sbr.rel (%p262) target = $region28
        $region27: #{tpu_custom_call.1} parent=11 // pred_region
          _
        $region28: #{tpu_custom_call.1} parent=11 // pred_fallthru
          _
        // Predicated region
        $region29: #{tpu_custom_call.1} parent=11 // pred_check
          %p265 = pneg %p149
        $region30: #{tpu_custom_call.1} parent=11 // pred_check_branch
          %267 = sbr.rel (%p265) target = $region32
        $region31: #{tpu_custom_call.1} parent=11 // pred_region
          _
        $region32: #{tpu_custom_call.1} parent=11 // pred_fallthru
          _
        // Predicated region
        $region33: #{tpu_custom_call.1} parent=11 // pred_check
          %p268 = pneg %p170
        $region34: #{tpu_custom_call.1} parent=11 // pred_check_branch
          %270 = sbr.rel (%p268) target = $region36
        $region35: #{tpu_custom_call.1} parent=11 // pred_region
          _
        $region36: #{tpu_custom_call.1} parent=11 // pred_fallthru
          _
        // Predicated region
        $region37: #{tpu_custom_call.1} parent=11 // pred_check
          %p271 = pneg %p191
        $region38: #{tpu_custom_call.1} parent=11 // pred_check_branch
          %273 = sbr.rel (%p271) target = $region40
        $region39: #{tpu_custom_call.1} parent=11 // pred_region
          _
        $region40: #{tpu_custom_call.1} parent=11 // pred_fallthru
          _
        // Predicated region
        $region41: #{tpu_custom_call.1} parent=11 // pred_check
          %p274 = pneg %p212
        $region42: #{tpu_custom_call.1} parent=11 // pred_check_branch
          %276 = sbr.rel (%p274) target = $region44
        $region43: #{tpu_custom_call.1} parent=11 // pred_region
          _
        $region44: #{tpu_custom_call.1} parent=11 // pred_fallthru
          _
      $region12: #{tpu_custom_call.1} parent=5 // pred_fallthru
        _
      %p277 = scmp.lt.s32.totalorder %s18, 2
      // Predicated region
      $region45: #{tpu_custom_call.1} parent=5 // pred_check
        %p278 = pneg %p277
      $region46: #{tpu_custom_call.1} parent=5 // pred_check_branch
        %280 = sbr.rel (%p278) target = $region48
      $region47: #{tpu_custom_call.1} parent=5 // pred_region
        // Predicated region
        $region49: #{tpu_custom_call.1} parent=47 // pred_check
          %p281 = pneg %p38
        $region50: #{tpu_custom_call.1} parent=47 // pred_check_branch
          %283 = sbr.rel (%p281) target = $region52
        $region51: #{tpu_custom_call.1} parent=47 // pred_region
          %p284 = scmp.lt.s32.totalorder %s18, 1
          %s285 = scalar_select %p284, %s18, 1
          %s286 = smul.addr %s285, 16
          %s287 = smul.addr %s286, 8
          %s288 = scalar_lea.vmem %s0, %s287
        $region52: #{tpu_custom_call.1} parent=47 // pred_fallthru
          _
      $region48: #{tpu_custom_call.1} parent=5 // pred_fallthru
        _
      %p289 = scmp.le.s32.totalorder 1, %s18
      %p290 = scmp.lt.s32.totalorder %s18, 3
      %p291 = pnand %p289, %p290
      %p292 = pneg %p291
      // Predicated region
      $region53: #{tpu_custom_call.1} parent=5 // pred_check
        _
      $region54: #{tpu_custom_call.1} parent=5 // pred_check_branch
        %294 = sbr.rel (%p291) target = $region56
      $region55: #{tpu_custom_call.1} parent=5 // pred_region
        %s295 = ssub.s32 %s18, 1
        %p296 = scmp.lt.s32.totalorder %s23, 1
        %s297 = scalar_select %p296, %s23, 1
        %s298 = smul.addr %s297, 16
        %s299 = smul.addr %s298, 8
        %s300 = scalar_lea.vmem %s0, %s299
        %p301 = pneg %p44
        %p302 = pneg %p41
        %p303 = pneg %p65
        %p304 = pneg %p62
        %p305 = pneg %p86
        %p306 = pneg %p83
        %p307 = pneg %p107
        %p308 = pneg %p104
        %p309 = pneg %p128
        %p310 = pneg %p125
        %p311 = pneg %p149
        %p312 = pneg %p146
        %p313 = pneg %p170
        %p314 = pneg %p167
        %p315 = pneg %p191
        %p316 = pneg %p188
        %p317 = pneg %p212
        %p318 = pneg %p209
        %p319 = pneg %p238
        %p320 = pneg %p235
        %s321 = sand.u32 %s225, 1
        %s322 = scalar_lea.sflag [#allocation3], %s321
        %s323 = sand.u32 %s225, 1
        %s324 = smul.addr %s323, 128
        %s325 = scalar_lea.vmem [#allocation2], %s324
        %p326 = scmp.lt.s32.totalorder %s23, 1
        %s327 = scalar_select %p326, %s23, 1
        %s328 = smul.addr %s327, 16
        %s329 = smul.addr %s328, 8
        %s330 = scalar_lea.vmem %s0, %s329
        %v332 = vld [vmem:[%s330] sm:$0xff]
        %v333 = vld [vmem:[%s330 + $0x8] sm:$0xff]
        %v334 = vld [vmem:[%s330 + $0x10] sm:$0xff]
        %v335 = vld [vmem:[%s330 + $0x18] sm:$0xff]
        %v336 = vld [vmem:[%s330 + $0x20] sm:$0xff]
        %v337 = vld [vmem:[%s330 + $0x28] sm:$0xff]
        %v338 = vld [vmem:[%s330 + $0x30] sm:$0xff]
        %v339 = vld [vmem:[%s330 + $0x38] sm:$0xff]
        %v340 = vld [vmem:[%s330 + $0x40] sm:$0xff]
        %v341 = vld [vmem:[%s330 + $0x48] sm:$0xff]
        %v342 = vld [vmem:[%s330 + $0x50] sm:$0xff]
        %v343 = vld [vmem:[%s330 + $0x58] sm:$0xff]
        %v344 = vld [vmem:[%s330 + $0x60] sm:$0xff]
        %v345 = vld [vmem:[%s330 + $0x68] sm:$0xff]
        %v346 = vld [vmem:[%s330 + $0x70] sm:$0xff]
        %v347 = vld [vmem:[%s330 + $0x78] sm:$0xff]
        %v348 = vadd.f32 %v332, %v333
        %349 = vadd.xlane.f32.xlu0 %v348
        %v350 = vpop.xlane.xlu0 %349
        %v351 = vadd.f32 %v334, %v335
        %352 = vadd.xlane.f32.xlu0 %v351
        %v353 = vpop.xlane.xlu0 %352
        %v354 = vadd.f32 %v336, %v337
        %355 = vadd.xlane.f32.xlu0 %v354
        %v356 = vpop.xlane.xlu0 %355
        %v357 = vadd.f32 %v338, %v339
        %358 = vadd.xlane.f32.xlu0 %v357
        %v359 = vpop.xlane.xlu0 %358
        %v360 = vadd.f32 %v340, %v341
        %361 = vadd.xlane.f32.xlu0 %v360
        %v362 = vpop.xlane.xlu0 %361
        %v363 = vadd.f32 %v342, %v343
        %364 = vadd.xlane.f32.xlu0 %v363
        %v365 = vpop.xlane.xlu0 %364
        %v366 = vadd.f32 %v344, %v345
        %367 = vadd.xlane.f32.xlu0 %v366
        %v368 = vpop.xlane.xlu0 %367
        %v369 = vadd.f32 %v346, %v347
        %370 = vadd.xlane.f32.xlu0 %v369
        %v371 = vpop.xlane.xlu0 %370
        %v372 = vld [vmem:[%s1] sm:$0xff]
        %v373 = vld [vmem:[%s1 + $0x8] sm:$0xff]
        %v374 = vld [vmem:[%s1 + $0x10] sm:$0xff]
        %v375 = vld [vmem:[%s1 + $0x18] sm:$0xff]
        %vm376 = vcmask 523264
        %v378 = vsel %vm376, %v372, 0
        %v381 = vsel %vm376, %v373, 0
        %v384 = vsel %vm376, %v374, 0
        %v387 = vsel %vm376, %v375, 0
        %389 = vmatprep.subr.mxu0 0.0
        %390 = vmatpush1.msra.mxu0 0.0
        %391 = vmatprep.subr.mxu0 0.0
        %392 = vmatpush1.msra.mxu0 0.0
        %393 = vmatprep.subr.mxu0 0.0
        %394 = vmatpush1.msra.mxu0 0.0
        %395 = vmatprep.subr.mxu0 0.0
        %396 = vmatpush1.msra.mxu0 0.0
        %397 = vmatprep.subr.mxu0 0.0
        %398 = vmatpush1.msra.mxu0 0.0
        %399 = vmatprep.subr.mxu0 0.0
        %400 = vmatpush1.msra.mxu0 0.0
        %401 = vmatprep.subr.mxu0 0.0
        %402 = vmatpush1.msra.mxu0 0.0
        %403 = vmatprep.subr.mxu0 0.0
        %404 = vmatpush1.msra.mxu0 0.0
        %405 = vmatprep.subr.mxu0 0.0
        %406 = vmatpush1.msra.mxu0 %v371
        %407 = vmatprep.subr.mxu0 0.0
        %408 = vmatpush1.msra.mxu0 %v368
        %409 = vmatprep.subr.mxu0 0.0
        %410 = vmatpush1.msra.mxu0 %v365
        %411 = vmatprep.subr.mxu0 0.0
        %412 = vmatpush1.msra.mxu0 %v362
        %413 = vmatprep.subr.mxu0 0.0
        %414 = vmatpush1.msra.mxu0 %v359
        %415 = vmatprep.subr.mxu0 0.0
        %416 = vmatpush1.msra.mxu0 %v356
        %417 = vmatprep.subr.mxu0 0.0
        %418 = vmatpush1.msra.mxu0 %v353
        %419 = vmatprep.subr.mxu0 0.0
        %420 = vmatpush1.msra.mxu0 %v350
        %421 = vmatprep.subr.mxu0 0.0
        %422 = vmatpush2.msra.mxu0 0.0
        %423 = vmatprep.subr.mxu0 0.0
        %424 = vmatpush2.msra.mxu0 0.0
        %425 = vmatprep.subr.mxu0 0.0
        %426 = vmatpush2.msra.mxu0 0.0
        %427 = vmatprep.subr.mxu0 0.0
        %428 = vmatpush2.msra.mxu0 0.0
        %429 = vmatprep.subr.mxu0 0.0
        %430 = vmatpush2.msra.mxu0 0.0
        %431 = vmatprep.subr.mxu0 0.0
        %432 = vmatpush2.msra.mxu0 0.0
        %433 = vmatprep.subr.mxu0 0.0
        %434 = vmatpush2.msra.mxu0 0.0
        %435 = vmatprep.subr.mxu0 0.0
        %436 = vmatpush2.msra.mxu0 0.0
        %437 = vmatprep.subr.mxu0 0.0
        %438 = vmatpush2.msra.mxu0 0.0
        %439 = vmatprep.subr.mxu0 0.0
        %440 = vmatpush2.msra.mxu0 0.0
        %441 = vmatprep.subr.mxu0 0.0
        %442 = vmatpush2.msra.mxu0 0.0
        %443 = vmatprep.subr.mxu0 0.0
        %444 = vmatpush2.msra.mxu0 0.0
        %445 = vmatprep.subr.mxu0 0.0
        %446 = vmatpush2.msra.mxu0 0.0
        %447 = vmatprep.subr.mxu0 0.0
        %448 = vmatpush2.msra.mxu0 0.0
        %449 = vmatprep.subr.mxu0 0.0
        %450 = vmatpush2.msra.mxu0 0.0
        %451 = vmatprep.subr.mxu0 0.0
        %452 = vmatpush2.msra.mxu0 0.0
        %453 = vmatprep.mubr.f32.mxu0 0.0
        %454 = vmatmul.mubr.f32.gmra.mxu0 %v378
        %v455 = vpop.f32.mrf.mxu0
        %v456 = vadd.f32 0.0, %v455
        %v457 = vpop.f32.mrf.mxu0
        %458 = vmatprep.mubr.f32.mxu0 0.0
        %459 = vmatmul.mubr.f32.gmra.mxu0 %v381
        %v460 = vpop.f32.mrf.mxu0
        %v461 = vadd.f32 0.0, %v460
        %v462 = vpop.f32.mrf.mxu0
        %463 = vmatprep.mubr.f32.mxu0 0.0
        %464 = vmatmul.mubr.f32.gmra.mxu0 %v384
        %v465 = vpop.f32.mrf.mxu0
        %v466 = vadd.f32 0.0, %v465
        %v467 = vpop.f32.mrf.mxu0
        %468 = vmatprep.mubr.f32.mxu0 0.0
        %469 = vmatmul.mubr.f32.gmra.mxu0 %v387
        %v470 = vpop.f32.mrf.mxu0
        %v471 = vadd.f32 0.0, %v470
        %v472 = vpop.f32.mrf.mxu0
        %473 = vdwg.mxu0
        %v474 = vmul.f32 %v456, 0.001953125
        %v475 = vmul.f32 %v461, 0.001953125
        %v476 = vmul.f32 %v466, 0.001953125
        %v477 = vmul.f32 %v471, 0.001953125
        %v478 = vld [vmem:[%s2] sm:$0xff]
        %v479 = vld [vmem:[%s2 + $0x8] sm:$0xff]
        %v480 = vld [vmem:[%s2 + $0x10] sm:$0xff]
        %v481 = vld [vmem:[%s2 + $0x18] sm:$0xff]
        %v482 = vld [vmem:[%s2 + $0x20] sm:$0xff]
        %v483 = vld [vmem:[%s2 + $0x28] sm:$0xff]
        %v484 = vld [vmem:[%s2 + $0x30] sm:$0xff]
        %v485 = vld [vmem:[%s2 + $0x38] sm:$0xff]
        %vm486 = vcmask 261120
        %v488 = vsel %vm486, %v478, 0
        %v491 = vsel %vm486, %v479, 0
        %v494 = vsel %vm486, %v480, 0
        %v497 = vsel %vm486, %v481, 0
        %v500 = vsel %vm486, %v482, 0
        %v503 = vsel %vm486, %v483, 0
        %v506 = vsel %vm486, %v484, 0
        %v509 = vsel %vm486, %v485, 0
        %511 = vmatprep.subr.mxu0 0.0
        %512 = vmatpush1.msra.mxu0 0.0
        %513 = vmatprep.subr.mxu0 0.0
        %514 = vmatpush1.msra.mxu0 0.0
        %515 = vmatprep.subr.mxu0 0.0
        %516 = vmatpush1.msra.mxu0 0.0
        %517 = vmatprep.subr.mxu0 0.0
        %518 = vmatpush1.msra.mxu0 0.0
        %519 = vmatprep.subr.mxu0 0.0
        %520 = vmatpush1.msra.mxu0 0.0
        %521 = vmatprep.subr.mxu0 0.0
        %522 = vmatpush1.msra.mxu0 0.0
        %523 = vmatprep.subr.mxu0 0.0
        %524 = vmatpush1.msra.mxu0 0.0
        %525 = vmatprep.subr.mxu0 0.0
        %526 = vmatpush1.msra.mxu0 0.0
        %527 = vmatprep.subr.mxu0 0.0
        %528 = vmatpush1.msra.mxu0 0.0
        %529 = vmatprep.subr.mxu0 0.0
        %530 = vmatpush1.msra.mxu0 0.0
        %531 = vmatprep.subr.mxu0 0.0
        %532 = vmatpush1.msra.mxu0 0.0
        %533 = vmatprep.subr.mxu0 0.0
        %534 = vmatpush1.msra.mxu0 0.0
        %535 = vmatprep.subr.mxu0 0.0
        %536 = vmatpush1.msra.mxu0 %v477
        %537 = vmatprep.subr.mxu0 0.0
        %538 = vmatpush1.msra.mxu0 %v476
        %539 = vmatprep.subr.mxu0 0.0
        %540 = vmatpush1.msra.mxu0 %v475
        %541 = vmatprep.subr.mxu0 0.0
        %542 = vmatpush1.msra.mxu0 %v474
        %543 = vmatprep.subr.mxu0 0.0
        %544 = vmatpush2.msra.mxu0 0.0
        %545 = vmatprep.subr.mxu0 0.0
        %546 = vmatpush2.msra.mxu0 0.0
        %547 = vmatprep.subr.mxu0 0.0
        %548 = vmatpush2.msra.mxu0 0.0
        %549 = vmatprep.subr.mxu0 0.0
        %550 = vmatpush2.msra.mxu0 0.0
        %551 = vmatprep.subr.mxu0 0.0
        %552 = vmatpush2.msra.mxu0 0.0
        %553 = vmatprep.subr.mxu0 0.0
        %554 = vmatpush2.msra.mxu0 0.0
        %555 = vmatprep.subr.mxu0 0.0
        %556 = vmatpush2.msra.mxu0 0.0
        %557 = vmatprep.subr.mxu0 0.0
        %558 = vmatpush2.msra.mxu0 0.0
        %559 = vmatprep.subr.mxu0 0.0
        %560 = vmatpush2.msra.mxu0 0.0
        %561 = vmatprep.subr.mxu0 0.0
        %562 = vmatpush2.msra.mxu0 0.0
        %563 = vmatprep.subr.mxu0 0.0
        %564 = vmatpush2.msra.mxu0 0.0
        %565 = vmatprep.subr.mxu0 0.0
        %566 = vmatpush2.msra.mxu0 0.0
        %567 = vmatprep.subr.mxu0 0.0
        %568 = vmatpush2.msra.mxu0 0.0
        %569 = vmatprep.subr.mxu0 0.0
        %570 = vmatpush2.msra.mxu0 0.0
        %571 = vmatprep.subr.mxu0 0.0
        %572 = vmatpush2.msra.mxu0 0.0
        %573 = vmatprep.subr.mxu0 0.0
        %574 = vmatpush2.msra.mxu0 0.0
        %575 = vmatprep.mubr.f32.mxu0 0.0
        %576 = vmatmul.mubr.f32.gmra.mxu0 %v488
        %v577 = vpop.f32.mrf.mxu0
        %v578 = vadd.f32 0.0, %v577
        %v579 = vpop.f32.mrf.mxu0
        %580 = vmatprep.mubr.f32.mxu0 0.0
        %581 = vmatmul.mubr.f32.gmra.mxu0 %v491
        %v582 = vpop.f32.mrf.mxu0
        %v583 = vadd.f32 0.0, %v582
        %v584 = vpop.f32.mrf.mxu0
        %585 = vmatprep.mubr.f32.mxu0 0.0
        %586 = vmatmul.mubr.f32.gmra.mxu0 %v494
        %v587 = vpop.f32.mrf.mxu0
        %v588 = vadd.f32 0.0, %v587
        %v589 = vpop.f32.mrf.mxu0
        %590 = vmatprep.mubr.f32.mxu0 0.0
        %591 = vmatmul.mubr.f32.gmra.mxu0 %v497
        %v592 = vpop.f32.mrf.mxu0
        %v593 = vadd.f32 0.0, %v592
        %v594 = vpop.f32.mrf.mxu0
        %595 = vmatprep.mubr.f32.mxu0 0.0
        %596 = vmatmul.mubr.f32.gmra.mxu0 %v500
        %v597 = vpop.f32.mrf.mxu0
        %v598 = vadd.f32 0.0, %v597
        %v599 = vpop.f32.mrf.mxu0
        %600 = vmatprep.mubr.f32.mxu0 0.0
        %601 = vmatmul.mubr.f32.gmra.mxu0 %v503
        %v602 = vpop.f32.mrf.mxu0
        %v603 = vadd.f32 0.0, %v602
        %v604 = vpop.f32.mrf.mxu0
        %605 = vmatprep.mubr.f32.mxu0 0.0
        %606 = vmatmul.mubr.f32.gmra.mxu0 %v506
        %v607 = vpop.f32.mrf.mxu0
        %v608 = vadd.f32 0.0, %v607
        %v609 = vpop.f32.mrf.mxu0
        %610 = vmatprep.mubr.f32.mxu0 0.0
        %611 = vmatmul.mubr.f32.gmra.mxu0 %v509
        %v612 = vpop.f32.mrf.mxu0
        %v613 = vadd.f32 0.0, %v612
        %v614 = vpop.f32.mrf.mxu0
        %615 = vdwg.mxu0
        %617 = vset.pattern.permute.xlu0 0
        %618 = vperm.xlu0 %617, %v578
        %v619 = vpop.permute.xlu0 %618
        %622 = vset.pattern.permute.xlu0 0
        %623 = vperm.xlu0 %622, %v583
        %v624 = vpop.permute.xlu0 %623
        %627 = vset.pattern.permute.xlu0 0
        %628 = vperm.xlu0 %627, %v588
        %v629 = vpop.permute.xlu0 %628
        %632 = vset.pattern.permute.xlu0 0
        %633 = vperm.xlu0 %632, %v593
        %v634 = vpop.permute.xlu0 %633
        %637 = vset.pattern.permute.xlu0 0
        %638 = vperm.xlu0 %637, %v598
        %v639 = vpop.permute.xlu0 %638
        %642 = vset.pattern.permute.xlu0 0
        %643 = vperm.xlu0 %642, %v603
        %v644 = vpop.permute.xlu0 %643
        %647 = vset.pattern.permute.xlu0 0
        %648 = vperm.xlu0 %647, %v608
        %v649 = vpop.permute.xlu0 %648
        %652 = vset.pattern.permute.xlu0 0
        %653 = vperm.xlu0 %652, %v613
        %v654 = vpop.permute.xlu0 %653
        %v656 = vsub.f32 %v332, %v619
        %v657 = vsub.f32 %v333, %v619
        %v658 = vsub.f32 %v334, %v624
        %v659 = vsub.f32 %v335, %v624
        %v660 = vsub.f32 %v336, %v629
        %v661 = vsub.f32 %v337, %v629
        %v662 = vsub.f32 %v338, %v634
        %v663 = vsub.f32 %v339, %v634
        %v664 = vsub.f32 %v340, %v639
        %v665 = vsub.f32 %v341, %v639
        %v666 = vsub.f32 %v342, %v644
        %v667 = vsub.f32 %v343, %v644
        %v668 = vsub.f32 %v344, %v649
        %v669 = vsub.f32 %v345, %v649
        %v670 = vsub.f32 %v346, %v654
        %v671 = vsub.f32 %v347, %v654
        %v672 = vmul.f32 %v656, %v656
        %v673 = vmul.f32 %v657, %v657
        %v674 = vmul.f32 %v658, %v658
        %v675 = vmul.f32 %v659, %v659
        %v676 = vmul.f32 %v660, %v660
        %v677 = vmul.f32 %v661, %v661
        %v678 = vmul.f32 %v662, %v662
        %v679 = vmul.f32 %v663, %v663
        %v680 = vmul.f32 %v664, %v664
        %v681 = vmul.f32 %v665, %v665
        %v682 = vmul.f32 %v666, %v666
        %v683 = vmul.f32 %v667, %v667
        %v684 = vmul.f32 %v668, %v668
        %v685 = vmul.f32 %v669, %v669
        %v686 = vmul.f32 %v670, %v670
        %v687 = vmul.f32 %v671, %v671
        %v688 = vadd.f32 %v672, %v673
        %689 = vadd.xlane.f32.xlu0 %v688
        %v690 = vpop.xlane.xlu0 %689
        %v691 = vadd.f32 %v674, %v675
        %692 = vadd.xlane.f32.xlu0 %v691
        %v693 = vpop.xlane.xlu0 %692
        %v694 = vadd.f32 %v676, %v677
        %695 = vadd.xlane.f32.xlu0 %v694
        %v696 = vpop.xlane.xlu0 %695
        %v697 = vadd.f32 %v678, %v679
        %698 = vadd.xlane.f32.xlu0 %v697
        %v699 = vpop.xlane.xlu0 %698
        %v700 = vadd.f32 %v680, %v681
        %701 = vadd.xlane.f32.xlu0 %v700
        %v702 = vpop.xlane.xlu0 %701
        %v703 = vadd.f32 %v682, %v683
        %704 = vadd.xlane.f32.xlu0 %v703
        %v705 = vpop.xlane.xlu0 %704
        %v706 = vadd.f32 %v684, %v685
        %707 = vadd.xlane.f32.xlu0 %v706
        %v708 = vpop.xlane.xlu0 %707
        %v709 = vadd.f32 %v686, %v687
        %710 = vadd.xlane.f32.xlu0 %v709
        %v711 = vpop.xlane.xlu0 %710
        %712 = vmatprep.subr.mxu0 0.0
        %713 = vmatpush1.msra.mxu0 0.0
        %714 = vmatprep.subr.mxu0 0.0
        %715 = vmatpush1.msra.mxu0 0.0
        %716 = vmatprep.subr.mxu0 0.0
        %717 = vmatpush1.msra.mxu0 0.0
        %718 = vmatprep.subr.mxu0 0.0
        %719 = vmatpush1.msra.mxu0 0.0
        %720 = vmatprep.subr.mxu0 0.0
        %721 = vmatpush1.msra.mxu0 0.0
        %722 = vmatprep.subr.mxu0 0.0
        %723 = vmatpush1.msra.mxu0 0.0
        %724 = vmatprep.subr.mxu0 0.0
        %725 = vmatpush1.msra.mxu0 0.0
        %726 = vmatprep.subr.mxu0 0.0
        %727 = vmatpush1.msra.mxu0 0.0
        %728 = vmatprep.subr.mxu0 0.0
        %729 = vmatpush1.msra.mxu0 %v711
        %730 = vmatprep.subr.mxu0 0.0
        %731 = vmatpush1.msra.mxu0 %v708
        %732 = vmatprep.subr.mxu0 0.0
        %733 = vmatpush1.msra.mxu0 %v705
        %734 = vmatprep.subr.mxu0 0.0
        %735 = vmatpush1.msra.mxu0 %v702
        %736 = vmatprep.subr.mxu0 0.0
        %737 = vmatpush1.msra.mxu0 %v699
        %738 = vmatprep.subr.mxu0 0.0
        %739 = vmatpush1.msra.mxu0 %v696
        %740 = vmatprep.subr.mxu0 0.0
        %741 = vmatpush1.msra.mxu0 %v693
        %742 = vmatprep.subr.mxu0 0.0
        %743 = vmatpush1.msra.mxu0 %v690
        %744 = vmatprep.subr.mxu0 0.0
        %745 = vmatpush2.msra.mxu0 0.0
        %746 = vmatprep.subr.mxu0 0.0
        %747 = vmatpush2.msra.mxu0 0.0
        %748 = vmatprep.subr.mxu0 0.0
        %749 = vmatpush2.msra.mxu0 0.0
        %750 = vmatprep.subr.mxu0 0.0
        %751 = vmatpush2.msra.mxu0 0.0
        %752 = vmatprep.subr.mxu0 0.0
        %753 = vmatpush2.msra.mxu0 0.0
        %754 = vmatprep.subr.mxu0 0.0
        %755 = vmatpush2.msra.mxu0 0.0
        %756 = vmatprep.subr.mxu0 0.0
        %757 = vmatpush2.msra.mxu0 0.0
        %758 = vmatprep.subr.mxu0 0.0
        %759 = vmatpush2.msra.mxu0 0.0
        %760 = vmatprep.subr.mxu0 0.0
        %761 = vmatpush2.msra.mxu0 0.0
        %762 = vmatprep.subr.mxu0 0.0
        %763 = vmatpush2.msra.mxu0 0.0
        %764 = vmatprep.subr.mxu0 0.0
        %765 = vmatpush2.msra.mxu0 0.0
        %766 = vmatprep.subr.mxu0 0.0
        %767 = vmatpush2.msra.mxu0 0.0
        %768 = vmatprep.subr.mxu0 0.0
        %769 = vmatpush2.msra.mxu0 0.0
        %770 = vmatprep.subr.mxu0 0.0
        %771 = vmatpush2.msra.mxu0 0.0
        %772 = vmatprep.subr.mxu0 0.0
        %773 = vmatpush2.msra.mxu0 0.0
        %774 = vmatprep.subr.mxu0 0.0
        %775 = vmatpush2.msra.mxu0 0.0
        %776 = vmatprep.mubr.f32.mxu0 0.0
        %777 = vmatmul.mubr.f32.gmra.mxu0 %v378
        %v778 = vpop.f32.mrf.mxu0
        %v779 = vadd.f32 0.0, %v778
        %v780 = vpop.f32.mrf.mxu0
        %781 = vmatprep.mubr.f32.mxu0 0.0
        %782 = vmatmul.mubr.f32.gmra.mxu0 %v381
        %v783 = vpop.f32.mrf.mxu0
        %v784 = vadd.f32 0.0, %v783
        %v785 = vpop.f32.mrf.mxu0
        %786 = vmatprep.mubr.f32.mxu0 0.0
        %787 = vmatmul.mubr.f32.gmra.mxu0 %v384
        %v788 = vpop.f32.mrf.mxu0
        %v789 = vadd.f32 0.0, %v788
        %v790 = vpop.f32.mrf.mxu0
        %791 = vmatprep.mubr.f32.mxu0 0.0
        %792 = vmatmul.mubr.f32.gmra.mxu0 %v387
        %v793 = vpop.f32.mrf.mxu0
        %v794 = vadd.f32 0.0, %v793
        %v795 = vpop.f32.mrf.mxu0
        %796 = vdwg.mxu0
        %v797 = vmul.f32 %v779, 0.001953125
        %v798 = vmul.f32 %v784, 0.001953125
        %v799 = vmul.f32 %v789, 0.001953125
        %v800 = vmul.f32 %v794, 0.001953125
        %v801 = vadd.f32 %v797, 1e-05
        %v802 = vadd.f32 %v798, 1e-05
        %v803 = vadd.f32 %v799, 1e-05
        %v804 = vadd.f32 %v800, 1e-05
        %v805 = vrsqrt.pop %v801
        %v806 = vrsqrt.pop %v802
        %v807 = vrsqrt.pop %v803
        %v808 = vrsqrt.pop %v804
        %809 = vmatprep.subr.mxu0 0.0
        %810 = vmatpush1.msra.mxu0 0.0
        %811 = vmatprep.subr.mxu0 0.0
        %812 = vmatpush1.msra.mxu0 0.0
        %813 = vmatprep.subr.mxu0 0.0
        %814 = vmatpush1.msra.mxu0 0.0
        %815 = vmatprep.subr.mxu0 0.0
        %816 = vmatpush1.msra.mxu0 0.0
        %817 = vmatprep.subr.mxu0 0.0
        %818 = vmatpush1.msra.mxu0 0.0
        %819 = vmatprep.subr.mxu0 0.0
        %820 = vmatpush1.msra.mxu0 0.0
        %821 = vmatprep.subr.mxu0 0.0
        %822 = vmatpush1.msra.mxu0 0.0
        %823 = vmatprep.subr.mxu0 0.0
        %824 = vmatpush1.msra.mxu0 0.0
        %825 = vmatprep.subr.mxu0 0.0
        %826 = vmatpush1.msra.mxu0 0.0
        %827 = vmatprep.subr.mxu0 0.0
        %828 = vmatpush1.msra.mxu0 0.0
        %829 = vmatprep.subr.mxu0 0.0
        %830 = vmatpush1.msra.mxu0 0.0
        %831 = vmatprep.subr.mxu0 0.0
        %832 = vmatpush1.msra.mxu0 0.0
        %833 = vmatprep.subr.mxu0 0.0
        %834 = vmatpush1.msra.mxu0 %v808
        %835 = vmatprep.subr.mxu0 0.0
        %836 = vmatpush1.msra.mxu0 %v807
        %837 = vmatprep.subr.mxu0 0.0
        %838 = vmatpush1.msra.mxu0 %v806
        %839 = vmatprep.subr.mxu0 0.0
        %840 = vmatpush1.msra.mxu0 %v805
        %841 = vmatprep.subr.mxu0 0.0
        %842 = vmatpush2.msra.mxu0 0.0
        %843 = vmatprep.subr.mxu0 0.0
        %844 = vmatpush2.msra.mxu0 0.0
        %845 = vmatprep.subr.mxu0 0.0
        %846 = vmatpush2.msra.mxu0 0.0
        %847 = vmatprep.subr.mxu0 0.0
        %848 = vmatpush2.msra.mxu0 0.0
        %849 = vmatprep.subr.mxu0 0.0
        %850 = vmatpush2.msra.mxu0 0.0
        %851 = vmatprep.subr.mxu0 0.0
        %852 = vmatpush2.msra.mxu0 0.0
        %853 = vmatprep.subr.mxu0 0.0
        %854 = vmatpush2.msra.mxu0 0.0
        %855 = vmatprep.subr.mxu0 0.0
        %856 = vmatpush2.msra.mxu0 0.0
        %857 = vmatprep.subr.mxu0 0.0
        %858 = vmatpush2.msra.mxu0 0.0
        %859 = vmatprep.subr.mxu0 0.0
        %860 = vmatpush2.msra.mxu0 0.0
        %861 = vmatprep.subr.mxu0 0.0
        %862 = vmatpush2.msra.mxu0 0.0
        %863 = vmatprep.subr.mxu0 0.0
        %864 = vmatpush2.msra.mxu0 0.0
        %865 = vmatprep.subr.mxu0 0.0
        %866 = vmatpush2.msra.mxu0 0.0
        %867 = vmatprep.subr.mxu0 0.0
        %868 = vmatpush2.msra.mxu0 0.0
        %869 = vmatprep.subr.mxu0 0.0
        %870 = vmatpush2.msra.mxu0 0.0
        %871 = vmatprep.subr.mxu0 0.0
        %872 = vmatpush2.msra.mxu0 0.0
        %873 = vmatprep.mubr.f32.mxu0 0.0
        %874 = vmatmul.mubr.f32.gmra.mxu0 %v488
        %v875 = vpop.f32.mrf.mxu0
        %v876 = vadd.f32 0.0, %v875
        %v877 = vpop.f32.mrf.mxu0
        %878 = vmatprep.mubr.f32.mxu0 0.0
        %879 = vmatmul.mubr.f32.gmra.mxu0 %v491
        %v880 = vpop.f32.mrf.mxu0
        %v881 = vadd.f32 0.0, %v880
        %v882 = vpop.f32.mrf.mxu0
        %883 = vmatprep.mubr.f32.mxu0 0.0
        %884 = vmatmul.mubr.f32.gmra.mxu0 %v494
        %v885 = vpop.f32.mrf.mxu0
        %v886 = vadd.f32 0.0, %v885
        %v887 = vpop.f32.mrf.mxu0
        %888 = vmatprep.mubr.f32.mxu0 0.0
        %889 = vmatmul.mubr.f32.gmra.mxu0 %v497
        %v890 = vpop.f32.mrf.mxu0
        %v891 = vadd.f32 0.0, %v890
        %v892 = vpop.f32.mrf.mxu0
        %893 = vmatprep.mubr.f32.mxu0 0.0
        %894 = vmatmul.mubr.f32.gmra.mxu0 %v500
        %v895 = vpop.f32.mrf.mxu0
        %v896 = vadd.f32 0.0, %v895
        %v897 = vpop.f32.mrf.mxu0
        %898 = vmatprep.mubr.f32.mxu0 0.0
        %899 = vmatmul.mubr.f32.gmra.mxu0 %v503
        %v900 = vpop.f32.mrf.mxu0
        %v901 = vadd.f32 0.0, %v900
        %v902 = vpop.f32.mrf.mxu0
        %903 = vmatprep.mubr.f32.mxu0 0.0
        %904 = vmatmul.mubr.f32.gmra.mxu0 %v506
        %v905 = vpop.f32.mrf.mxu0
        %v906 = vadd.f32 0.0, %v905
        %v907 = vpop.f32.mrf.mxu0
        %908 = vmatprep.mubr.f32.mxu0 0.0
        %909 = vmatmul.mubr.f32.gmra.mxu0 %v509
        %v910 = vpop.f32.mrf.mxu0
        %v911 = vadd.f32 0.0, %v910
        %v912 = vpop.f32.mrf.mxu0
        %913 = vdwg.mxu0
        %915 = vset.pattern.permute.xlu0 0
        %916 = vperm.xlu0 %915, %v876
        %v917 = vpop.permute.xlu0 %916
        %920 = vset.pattern.permute.xlu0 0
        %921 = vperm.xlu0 %920, %v881
        %v922 = vpop.permute.xlu0 %921
        %925 = vset.pattern.permute.xlu0 0
        %926 = vperm.xlu0 %925, %v886
        %v927 = vpop.permute.xlu0 %926
        %930 = vset.pattern.permute.xlu0 0
        %931 = vperm.xlu0 %930, %v891
        %v932 = vpop.permute.xlu0 %931
        %935 = vset.pattern.permute.xlu0 0
        %936 = vperm.xlu0 %935, %v896
        %v937 = vpop.permute.xlu0 %936
        %940 = vset.pattern.permute.xlu0 0
        %941 = vperm.xlu0 %940, %v901
        %v942 = vpop.permute.xlu0 %941
        %945 = vset.pattern.permute.xlu0 0
        %946 = vperm.xlu0 %945, %v906
        %v947 = vpop.permute.xlu0 %946
        %950 = vset.pattern.permute.xlu0 0
        %951 = vperm.xlu0 %950, %v911
        %v952 = vpop.permute.xlu0 %951
        %v954 = vmul.f32 %v656, %v917
        %v955 = vmul.f32 %v657, %v917
        %v956 = vmul.f32 %v658, %v922
        %v957 = vmul.f32 %v659, %v922
        %v958 = vmul.f32 %v660, %v927
        %v959 = vmul.f32 %v661, %v927
        %v960 = vmul.f32 %v662, %v932
        %v961 = vmul.f32 %v663, %v932
        %v962 = vmul.f32 %v664, %v937
        %v963 = vmul.f32 %v665, %v937
        %v964 = vmul.f32 %v666, %v942
        %v965 = vmul.f32 %v667, %v942
        %v966 = vmul.f32 %v668, %v947
        %v967 = vmul.f32 %v669, %v947
        %v968 = vmul.f32 %v670, %v952
        %v969 = vmul.f32 %v671, %v952
        %v970 = vld [vmem:[%s3] sm:$0xff]
        %v971 = vld [vmem:[%s3 + $0x8] sm:$0xff]
        %v972 = vld [vmem:[%s3 + $0x10] sm:$0xff]
        %v973 = vld [vmem:[%s3 + $0x18] sm:$0xff]
        %v974 = vld [vmem:[%s3 + $0x20] sm:$0xff]
        %v975 = vld [vmem:[%s3 + $0x28] sm:$0xff]
        %v976 = vld [vmem:[%s3 + $0x30] sm:$0xff]
        %v977 = vld [vmem:[%s3 + $0x38] sm:$0xff]
        %979 = vset.pattern.permute.xlu0 0
        %980 = vperm.xlu0 %979, %v970
        %v981 = vpop.permute.xlu0 %980
        %984 = vset.pattern.permute.xlu0 0
        %985 = vperm.xlu0 %984, %v971
        %v986 = vpop.permute.xlu0 %985
        %989 = vset.pattern.permute.xlu0 0
        %990 = vperm.xlu0 %989, %v972
        %v991 = vpop.permute.xlu0 %990
        %994 = vset.pattern.permute.xlu0 0
        %995 = vperm.xlu0 %994, %v973
        %v996 = vpop.permute.xlu0 %995
        %999 = vset.pattern.permute.xlu0 0
        %1000 = vperm.xlu0 %999, %v974
        %v1001 = vpop.permute.xlu0 %1000
        %1004 = vset.pattern.permute.xlu0 0
        %1005 = vperm.xlu0 %1004, %v975
        %v1006 = vpop.permute.xlu0 %1005
        %1009 = vset.pattern.permute.xlu0 0
        %1010 = vperm.xlu0 %1009, %v976
        %v1011 = vpop.permute.xlu0 %1010
        %1014 = vset.pattern.permute.xlu0 0
        %1015 = vperm.xlu0 %1014, %v977
        %v1016 = vpop.permute.xlu0 %1015
        %v1018 = vmul.f32 %v954, %v981
        %v1019 = vmul.f32 %v955, %v981
        %v1020 = vmul.f32 %v956, %v986
        %v1021 = vmul.f32 %v957, %v986
        %v1022 = vmul.f32 %v958, %v991
        %v1023 = vmul.f32 %v959, %v991
        %v1024 = vmul.f32 %v960, %v996
        %v1025 = vmul.f32 %v961, %v996
        %v1026 = vmul.f32 %v962, %v1001
        %v1027 = vmul.f32 %v963, %v1001
        %v1028 = vmul.f32 %v964, %v1006
        %v1029 = vmul.f32 %v965, %v1006
        %v1030 = vmul.f32 %v966, %v1011
        %v1031 = vmul.f32 %v967, %v1011
        %v1032 = vmul.f32 %v968, %v1016
        %v1033 = vmul.f32 %v969, %v1016
        %v1034 = vld [vmem:[%s4] sm:$0xff]
        %v1035 = vld [vmem:[%s4 + $0x8] sm:$0xff]
        %v1036 = vld [vmem:[%s4 + $0x10] sm:$0xff]
        %v1037 = vld [vmem:[%s4 + $0x18] sm:$0xff]
        %v1038 = vld [vmem:[%s4 + $0x20] sm:$0xff]
        %v1039 = vld [vmem:[%s4 + $0x28] sm:$0xff]
        %v1040 = vld [vmem:[%s4 + $0x30] sm:$0xff]
        %v1041 = vld [vmem:[%s4 + $0x38] sm:$0xff]
        %1043 = vset.pattern.permute.xlu0 0
        %1044 = vperm.xlu0 %1043, %v1034
        %v1045 = vpop.permute.xlu0 %1044
        %1048 = vset.pattern.permute.xlu0 0
        %1049 = vperm.xlu0 %1048, %v1035
        %v1050 = vpop.permute.xlu0 %1049
        %1053 = vset.pattern.permute.xlu0 0
        %1054 = vperm.xlu0 %1053, %v1036
        %v1055 = vpop.permute.xlu0 %1054
        %1058 = vset.pattern.permute.xlu0 0
        %1059 = vperm.xlu0 %1058, %v1037
        %v1060 = vpop.permute.xlu0 %1059
        %1063 = vset.pattern.permute.xlu0 0
        %1064 = vperm.xlu0 %1063, %v1038
        %v1065 = vpop.permute.xlu0 %1064
        %1068 = vset.pattern.permute.xlu0 0
        %1069 = vperm.xlu0 %1068, %v1039
        %v1070 = vpop.permute.xlu0 %1069
        %1073 = vset.pattern.permute.xlu0 0
        %1074 = vperm.xlu0 %1073, %v1040
        %v1075 = vpop.permute.xlu0 %1074
        %1078 = vset.pattern.permute.xlu0 0
        %1079 = vperm.xlu0 %1078, %v1041
        %v1080 = vpop.permute.xlu0 %1079
        %v1082 = vadd.f32 %v1018, %v1045
        %v1083 = vadd.f32 %v1019, %v1045
        %v1084 = vadd.f32 %v1020, %v1050
        %v1085 = vadd.f32 %v1021, %v1050
        %v1086 = vadd.f32 %v1022, %v1055
        %v1087 = vadd.f32 %v1023, %v1055
        %v1088 = vadd.f32 %v1024, %v1060
        %v1089 = vadd.f32 %v1025, %v1060
        %v1090 = vadd.f32 %v1026, %v1065
        %v1091 = vadd.f32 %v1027, %v1065
        %v1092 = vadd.f32 %v1028, %v1070
        %v1093 = vadd.f32 %v1029, %v1070
        %v1094 = vadd.f32 %v1030, %v1075
        %v1095 = vadd.f32 %v1031, %v1075
        %v1096 = vadd.f32 %v1032, %v1080
        %v1097 = vadd.f32 %v1033, %v1080
        %v1098 = vld [vmem:[%s5] sm:$0xf]
        %v1099 = vld [vmem:[%s5 + $0x4] sm:$0xf]
        %v1100 = vld [vmem:[%s5 + $0x8] sm:$0xf]
        %v1101 = vld [vmem:[%s5 + $0xc] sm:$0xf]
        %v1102 = vld [vmem:[%s5 + $0x10] sm:$0xf]
        %v1103 = vld [vmem:[%s5 + $0x14] sm:$0xf]
        %v1104 = vld [vmem:[%s5 + $0x18] sm:$0xf]
        %v1105 = vld [vmem:[%s5 + $0x1c] sm:$0xf]
        %v1106 = vld [vmem:[%s5 + $0x20] sm:$0xf]
        %v1107 = vld [vmem:[%s5 + $0x24] sm:$0xf]
        %v1108 = vld [vmem:[%s5 + $0x28] sm:$0xf]
        %v1109 = vld [vmem:[%s5 + $0x2c] sm:$0xf]
        %v1110 = vld [vmem:[%s5 + $0x30] sm:$0xf]
        %v1111 = vld [vmem:[%s5 + $0x34] sm:$0xf]
        %v1112 = vld [vmem:[%s5 + $0x38] sm:$0xf]
        %v1113 = vld [vmem:[%s5 + $0x3c] sm:$0xf]
        %v1114 = vld [vmem:[%s5 + $0x40] sm:$0xf]
        %v1115 = vld [vmem:[%s5 + $0x44] sm:$0xf]
        %v1116 = vld [vmem:[%s5 + $0x48] sm:$0xf]
        %v1117 = vld [vmem:[%s5 + $0x4c] sm:$0xf]
        %v1118 = vld [vmem:[%s5 + $0x50] sm:$0xf]
        %v1119 = vld [vmem:[%s5 + $0x54] sm:$0xf]
        %v1120 = vld [vmem:[%s5 + $0x58] sm:$0xf]
        %v1121 = vld [vmem:[%s5 + $0x5c] sm:$0xf]
        %v1122 = vpack.c.bf16 %v1084, %v1082
        %v1123 = vpack.c.bf16 %v1085, %v1083
        %v1124 = vpack.c.bf16 %v1088, %v1086
        %v1125 = vpack.c.bf16 %v1089, %v1087
        %v1126 = vpack.c.bf16 %v1092, %v1090
        %v1127 = vpack.c.bf16 %v1093, %v1091
        %v1128 = vpack.c.bf16 %v1096, %v1094
        %v1129 = vpack.c.bf16 %v1097, %v1095
        %v1130 = vld [vmem:[%s6] sm:$0xff]
        %v1131 = vld [vmem:[%s6 + $0x8] sm:$0xff]
        %v1132 = vld [vmem:[%s6 + $0x10] sm:$0xff]
        %v1133 = vld [vmem:[%s6 + $0x18] sm:$0xff]
        %v1134 = vld [vmem:[%s6 + $0x20] sm:$0xff]
        %v1135 = vld [vmem:[%s6 + $0x28] sm:$0xff]
        %v1136 = vld [vmem:[%s6 + $0x30] sm:$0xff]
        %v1137 = vld [vmem:[%s6 + $0x38] sm:$0xff]
        %v1138 = vld [vmem:[%s6 + $0x40] sm:$0xff]
        %v1139 = vld [vmem:[%s6 + $0x48] sm:$0xff]
        %v1140 = vld [vmem:[%s6 + $0x50] sm:$0xff]
        %v1141 = vld [vmem:[%s6 + $0x58] sm:$0xff]
        %v1142 = vld [vmem:[%s6 + $0x60] sm:$0xff]
        %v1143 = vld [vmem:[%s6 + $0x68] sm:$0xff]
        %v1144 = vld [vmem:[%s6 + $0x70] sm:$0xff]
        %v1145 = vld [vmem:[%s6 + $0x78] sm:$0xff]
        %v1146 = vld [vmem:[%s6 + $0x80] sm:$0xff]
        %v1147 = vld [vmem:[%s6 + $0x88] sm:$0xff]
        %v1148 = vld [vmem:[%s6 + $0x90] sm:$0xff]
        %v1149 = vld [vmem:[%s6 + $0x98] sm:$0xff]
        %v1150 = vld [vmem:[%s6 + $0xa0] sm:$0xff]
        %v1151 = vld [vmem:[%s6 + $0xa8] sm:$0xff]
        %v1152 = vld [vmem:[%s6 + $0xb0] sm:$0xff]
        %v1153 = vld [vmem:[%s6 + $0xb8] sm:$0xff]
        %1155 = vset.pattern.permute.xlu0 0
        %1156 = vperm.xlu0 %1155, %v1130
        %v1157 = vpop.permute.xlu0 %1156
        %1160 = vset.pattern.permute.xlu0 0
        %1161 = vperm.xlu0 %1160, %v1131
        %v1162 = vpop.permute.xlu0 %1161
        %1165 = vset.pattern.permute.xlu0 0
        %1166 = vperm.xlu0 %1165, %v1132
        %v1167 = vpop.permute.xlu0 %1166
        %1170 = vset.pattern.permute.xlu0 0
        %1171 = vperm.xlu0 %1170, %v1133
        %v1172 = vpop.permute.xlu0 %1171
        %1175 = vset.pattern.permute.xlu0 0
        %1176 = vperm.xlu0 %1175, %v1134
        %v1177 = vpop.permute.xlu0 %1176
        %1180 = vset.pattern.permute.xlu0 0
        %1181 = vperm.xlu0 %1180, %v1135
        %v1182 = vpop.permute.xlu0 %1181
        %1185 = vset.pattern.permute.xlu0 0
        %1186 = vperm.xlu0 %1185, %v1136
        %v1187 = vpop.permute.xlu0 %1186
        %1190 = vset.pattern.permute.xlu0 0
        %1191 = vperm.xlu0 %1190, %v1137
        %v1192 = vpop.permute.xlu0 %1191
        %1195 = vset.pattern.permute.xlu0 0
        %1196 = vperm.xlu0 %1195, %v1138
        %v1197 = vpop.permute.xlu0 %1196
        %1200 = vset.pattern.permute.xlu0 0
        %1201 = vperm.xlu0 %1200, %v1139
        %v1202 = vpop.permute.xlu0 %1201
        %1205 = vset.pattern.permute.xlu0 0
        %1206 = vperm.xlu0 %1205, %v1140
        %v1207 = vpop.permute.xlu0 %1206
        %1210 = vset.pattern.permute.xlu0 0
        %1211 = vperm.xlu0 %1210, %v1141
        %v1212 = vpop.permute.xlu0 %1211
        %1215 = vset.pattern.permute.xlu0 0
        %1216 = vperm.xlu0 %1215, %v1142
        %v1217 = vpop.permute.xlu0 %1216
        %1220 = vset.pattern.permute.xlu0 0
        %1221 = vperm.xlu0 %1220, %v1143
        %v1222 = vpop.permute.xlu0 %1221
        %1225 = vset.pattern.permute.xlu0 0
        %1226 = vperm.xlu0 %1225, %v1144
        %v1227 = vpop.permute.xlu0 %1226
        %1230 = vset.pattern.permute.xlu0 0
        %1231 = vperm.xlu0 %1230, %v1145
        %v1232 = vpop.permute.xlu0 %1231
        %1235 = vset.pattern.permute.xlu0 0
        %1236 = vperm.xlu0 %1235, %v1146
        %v1237 = vpop.permute.xlu0 %1236
        %1240 = vset.pattern.permute.xlu0 0
        %1241 = vperm.xlu0 %1240, %v1147
        %v1242 = vpop.permute.xlu0 %1241
        %1245 = vset.pattern.permute.xlu0 0
        %1246 = vperm.xlu0 %1245, %v1148
        %v1247 = vpop.permute.xlu0 %1246
        %1250 = vset.pattern.permute.xlu0 0
        %1251 = vperm.xlu0 %1250, %v1149
        %v1252 = vpop.permute.xlu0 %1251
        %1255 = vset.pattern.permute.xlu0 0
        %1256 = vperm.xlu0 %1255, %v1150
        %v1257 = vpop.permute.xlu0 %1256
        %1260 = vset.pattern.permute.xlu0 0
        %1261 = vperm.xlu0 %1260, %v1151
        %v1262 = vpop.permute.xlu0 %1261
        %1265 = vset.pattern.permute.xlu0 0
        %1266 = vperm.xlu0 %1265, %v1152
        %v1267 = vpop.permute.xlu0 %1266
        %1270 = vset.pattern.permute.xlu0 0
        %1271 = vperm.xlu0 %1270, %v1153
        %v1272 = vpop.permute.xlu0 %1271
        %v1298 = vunpack.c.l.b16 %v1098
        %v1299 = vunpack.c.l.b16 %v1099
        %v1300 = vunpack.c.l.b16 %v1100
        %v1301 = vunpack.c.l.b16 %v1101
        %v1302 = vunpack.c.l.b16 %v1102
        %v1303 = vunpack.c.l.b16 %v1103
        %v1304 = vunpack.c.l.b16 %v1104
        %v1305 = vunpack.c.l.b16 %v1105
        %v1306 = vunpack.c.l.b16 %v1106
        %v1307 = vunpack.c.l.b16 %v1107
        %v1308 = vunpack.c.l.b16 %v1108
        %v1309 = vunpack.c.l.b16 %v1109
        %v1310 = vunpack.c.l.b16 %v1110
        %v1311 = vunpack.c.l.b16 %v1111
        %v1312 = vunpack.c.l.b16 %v1112
        %v1313 = vunpack.c.l.b16 %v1113
        %v1314 = vunpack.c.l.b16 %v1114
        %v1315 = vunpack.c.l.b16 %v1115
        %v1316 = vunpack.c.l.b16 %v1116
        %v1317 = vunpack.c.l.b16 %v1117
        %v1318 = vunpack.c.l.b16 %v1118
        %v1319 = vunpack.c.l.b16 %v1119
        %v1320 = vunpack.c.l.b16 %v1120
        %v1321 = vunpack.c.l.b16 %v1121
        %v1322 = vpack.c.b16 %v1299, %v1298
        %v1323 = vpack.c.b16 %v1301, %v1300
        %v1324 = vpack.c.b16 %v1303, %v1302
        %v1325 = vpack.c.b16 %v1305, %v1304
        %v1326 = vpack.c.b16 %v1307, %v1306
        %v1327 = vpack.c.b16 %v1309, %v1308
        %v1328 = vpack.c.b16 %v1311, %v1310
        %v1329 = vpack.c.b16 %v1313, %v1312
        %v1330 = vpack.c.b16 %v1315, %v1314
        %v1331 = vpack.c.b16 %v1317, %v1316
        %v1332 = vpack.c.b16 %v1319, %v1318
        %v1333 = vpack.c.b16 %v1321, %v1320
        %v1335 = vsel %vm376, %v1322, 0
        %v1338 = vsel %vm376, %v1323, 0
        %v1341 = vsel %vm376, %v1324, 0
        %v1344 = vsel %vm376, %v1325, 0
        %v1347 = vsel %vm376, %v1326, 0
        %v1350 = vsel %vm376, %v1327, 0
        %v1353 = vsel %vm376, %v1328, 0
        %v1356 = vsel %vm376, %v1329, 0
        %v1359 = vsel %vm376, %v1330, 0
        %v1362 = vsel %vm376, %v1331, 0
        %v1365 = vsel %vm376, %v1332, 0
        %v1368 = vsel %vm376, %v1333, 0
        %1370 = vmatprep.subr.bf16.mxu0 0
        %1371 = vmatpush1.bf16.msra.mxu0 0
        %1372 = vmatprep.subr.bf16.mxu0 0
        %1373 = vmatpush1.bf16.msra.mxu0 0
        %1374 = vmatprep.subr.bf16.mxu0 0
        %1375 = vmatpush1.bf16.msra.mxu0 0
        %1376 = vmatprep.subr.bf16.mxu0 0
        %1377 = vmatpush1.bf16.msra.mxu0 0
        %1378 = vmatprep.subr.bf16.mxu0 %v1129
        %1379 = vmatpush1.bf16.msra.mxu0 %v1128
        %1380 = vmatprep.subr.bf16.mxu0 %v1127
        %1381 = vmatpush1.bf16.msra.mxu0 %v1126
        %1382 = vmatprep.subr.bf16.mxu0 %v1125
        %1383 = vmatpush1.bf16.msra.mxu0 %v1124
        %1384 = vmatprep.subr.bf16.mxu0 %v1123
        %1385 = vmatpush1.bf16.msra.mxu0 %v1122
        %1386 = vmatprep.subr.bf16.mxu0 0
        %1387 = vmatpush2.bf16.msra.mxu0 0
        %1388 = vmatprep.subr.bf16.mxu0 0
        %1389 = vmatpush2.bf16.msra.mxu0 0
        %1390 = vmatprep.subr.bf16.mxu0 0
        %1391 = vmatpush2.bf16.msra.mxu0 0
        %1392 = vmatprep.subr.bf16.mxu0 0
        %1393 = vmatpush2.bf16.msra.mxu0 0
        %1394 = vmatprep.subr.bf16.mxu0 0
        %1395 = vmatpush2.bf16.msra.mxu0 0
        %1396 = vmatprep.subr.bf16.mxu0 0
        %1397 = vmatpush2.bf16.msra.mxu0 0
        %1398 = vmatprep.subr.bf16.mxu0 0
        %1399 = vmatpush2.bf16.msra.mxu0 0
        %1400 = vmatprep.subr.bf16.mxu0 0
        %1401 = vmatpush2.bf16.msra.mxu0 0
        %1402 = vmatprep.mubr.bf16.mxu0 0
        %1403 = vmatmul.mubr.bf16.gmra.mxu0 %v1335
        %v1404 = vpop.f32.mrf.mxu0
        %v1405 = vadd.f32 %v1157, %v1404
        %v1406 = vpop.f32.mrf.mxu0
        %v1407 = vadd.f32 %v1157, %v1406
        %v1408 = vpop.f32.mrf.mxu0
        %v1409 = vadd.f32 %v1162, %v1408
        %v1410 = vpop.f32.mrf.mxu0
        %v1411 = vadd.f32 %v1162, %v1410
        %1412 = vmatprep.mubr.bf16.mxu0 0
        %1413 = vmatmul.mubr.bf16.gmra.mxu0 %v1338
        %v1414 = vpop.f32.mrf.mxu0
        %v1415 = vadd.f32 %v1167, %v1414
        %v1416 = vpop.f32.mrf.mxu0
        %v1417 = vadd.f32 %v1167, %v1416
        %v1418 = vpop.f32.mrf.mxu0
        %v1419 = vadd.f32 %v1172, %v1418
        %v1420 = vpop.f32.mrf.mxu0
        %v1421 = vadd.f32 %v1172, %v1420
        %1422 = vmatprep.mubr.bf16.mxu0 0
        %1423 = vmatmul.mubr.bf16.gmra.mxu0 %v1341
        %v1424 = vpop.f32.mrf.mxu0
        %v1425 = vadd.f32 %v1177, %v1424
        %v1426 = vpop.f32.mrf.mxu0
        %v1427 = vadd.f32 %v1177, %v1426
        %v1428 = vpop.f32.mrf.mxu0
        %v1429 = vadd.f32 %v1182, %v1428
        %v1430 = vpop.f32.mrf.mxu0
        %v1431 = vadd.f32 %v1182, %v1430
        %1432 = vmatprep.mubr.bf16.mxu0 0
        %1433 = vmatmul.mubr.bf16.gmra.mxu0 %v1344
        %v1434 = vpop.f32.mrf.mxu0
        %v1435 = vadd.f32 %v1187, %v1434
        %v1436 = vpop.f32.mrf.mxu0
        %v1437 = vadd.f32 %v1187, %v1436
        %v1438 = vpop.f32.mrf.mxu0
        %v1439 = vadd.f32 %v1192, %v1438
        %v1440 = vpop.f32.mrf.mxu0
        %v1441 = vadd.f32 %v1192, %v1440
        %1442 = vmatprep.mubr.bf16.mxu0 0
        %1443 = vmatmul.mubr.bf16.gmra.mxu0 %v1347
        %v1444 = vpop.f32.mrf.mxu0
        %v1445 = vadd.f32 %v1197, %v1444
        %v1446 = vpop.f32.mrf.mxu0
        %v1447 = vadd.f32 %v1197, %v1446
        %v1448 = vpop.f32.mrf.mxu0
        %v1449 = vadd.f32 %v1202, %v1448
        %v1450 = vpop.f32.mrf.mxu0
        %v1451 = vadd.f32 %v1202, %v1450
        %1452 = vmatprep.mubr.bf16.mxu0 0
        %1453 = vmatmul.mubr.bf16.gmra.mxu0 %v1350
        %v1454 = vpop.f32.mrf.mxu0
        %v1455 = vadd.f32 %v1207, %v1454
        %v1456 = vpop.f32.mrf.mxu0
        %v1457 = vadd.f32 %v1207, %v1456
        %v1458 = vpop.f32.mrf.mxu0
        %v1459 = vadd.f32 %v1212, %v1458
        %v1460 = vpop.f32.mrf.mxu0
        %v1461 = vadd.f32 %v1212, %v1460
        %1462 = vmatprep.mubr.bf16.mxu0 0
        %1463 = vmatmul.mubr.bf16.gmra.mxu0 %v1353
        %v1464 = vpop.f32.mrf.mxu0
        %v1465 = vadd.f32 %v1217, %v1464
        %v1466 = vpop.f32.mrf.mxu0
        %v1467 = vadd.f32 %v1217, %v1466
        %v1468 = vpop.f32.mrf.mxu0
        %v1469 = vadd.f32 %v1222, %v1468
        %v1470 = vpop.f32.mrf.mxu0
        %v1471 = vadd.f32 %v1222, %v1470
        %1472 = vmatprep.mubr.bf16.mxu0 0
        %1473 = vmatmul.mubr.bf16.gmra.mxu0 %v1356
        %v1474 = vpop.f32.mrf.mxu0
        %v1475 = vadd.f32 %v1227, %v1474
        %v1476 = vpop.f32.mrf.mxu0
        %v1477 = vadd.f32 %v1227, %v1476
        %v1478 = vpop.f32.mrf.mxu0
        %v1479 = vadd.f32 %v1232, %v1478
        %v1480 = vpop.f32.mrf.mxu0
        %v1481 = vadd.f32 %v1232, %v1480
        %1482 = vmatprep.mubr.bf16.mxu0 0
        %1483 = vmatmul.mubr.bf16.gmra.mxu0 %v1359
        %v1484 = vpop.f32.mrf.mxu0
        %v1485 = vadd.f32 %v1237, %v1484
        %v1486 = vpop.f32.mrf.mxu0
        %v1487 = vadd.f32 %v1237, %v1486
        %v1488 = vpop.f32.mrf.mxu0
        %v1489 = vadd.f32 %v1242, %v1488
        %v1490 = vpop.f32.mrf.mxu0
        %v1491 = vadd.f32 %v1242, %v1490
        %1492 = vmatprep.mubr.bf16.mxu0 0
        %1493 = vmatmul.mubr.bf16.gmra.mxu0 %v1362
        %v1494 = vpop.f32.mrf.mxu0
        %v1495 = vadd.f32 %v1247, %v1494
        %v1496 = vpop.f32.mrf.mxu0
        %v1497 = vadd.f32 %v1247, %v1496
        %v1498 = vpop.f32.mrf.mxu0
        %v1499 = vadd.f32 %v1252, %v1498
        %v1500 = vpop.f32.mrf.mxu0
        %v1501 = vadd.f32 %v1252, %v1500
        %1502 = vmatprep.mubr.bf16.mxu0 0
        %1503 = vmatmul.mubr.bf16.gmra.mxu0 %v1365
        %v1504 = vpop.f32.mrf.mxu0
        %v1505 = vadd.f32 %v1257, %v1504
        %v1506 = vpop.f32.mrf.mxu0
        %v1507 = vadd.f32 %v1257, %v1506
        %v1508 = vpop.f32.mrf.mxu0
        %v1509 = vadd.f32 %v1262, %v1508
        %v1510 = vpop.f32.mrf.mxu0
        %v1511 = vadd.f32 %v1262, %v1510
        %1512 = vmatprep.mubr.bf16.mxu0 0
        %1513 = vmatmul.mubr.bf16.gmra.mxu0 %v1368
        %v1514 = vpop.f32.mrf.mxu0
        %v1515 = vadd.f32 %v1267, %v1514
        %v1516 = vpop.f32.mrf.mxu0
        %v1517 = vadd.f32 %v1267, %v1516
        %v1518 = vpop.f32.mrf.mxu0
        %v1519 = vadd.f32 %v1272, %v1518
        %v1520 = vpop.f32.mrf.mxu0
        %v1521 = vadd.f32 %v1272, %v1520
        %1522 = vdwg.mxu0
        %v1523 = vpack.c.bf16 %v1409, %v1405
        %v1524 = vpack.c.bf16 %v1411, %v1407
        %v1525 = vpack.c.bf16 %v1419, %v1415
        %v1526 = vpack.c.bf16 %v1421, %v1417
        %v1527 = vpack.c.bf16 %v1429, %v1425
        %v1528 = vpack.c.bf16 %v1431, %v1427
        %v1529 = vpack.c.bf16 %v1439, %v1435
        %v1530 = vpack.c.bf16 %v1441, %v1437
        %v1531 = vpack.c.bf16 %v1449, %v1445
        %v1532 = vpack.c.bf16 %v1451, %v1447
        %v1533 = vpack.c.bf16 %v1459, %v1455
        %v1534 = vpack.c.bf16 %v1461, %v1457
        %v1535 = vpack.c.bf16 %v1469, %v1465
        %v1536 = vpack.c.bf16 %v1471, %v1467
        %v1537 = vpack.c.bf16 %v1479, %v1475
        %v1538 = vpack.c.bf16 %v1481, %v1477
        %v1539 = vpack.c.bf16 %v1489, %v1485
        %v1540 = vpack.c.bf16 %v1491, %v1487
        %v1541 = vpack.c.bf16 %v1499, %v1495
        %v1542 = vpack.c.bf16 %v1501, %v1497
        %v1543 = vpack.c.bf16 %v1509, %v1505
        %v1544 = vpack.c.bf16 %v1511, %v1507
        %v1545 = vpack.c.bf16 %v1519, %v1515
        %v1546 = vpack.c.bf16 %v1521, %v1517
        %1547 = vxpose.xlu0.c.b16.start [1/8] %v1523, 128
        %1548 = vxpose.xlu0.c.b16.cont [2/8] %v1525, 128
        %1549 = vxpose.xlu0.c.b16.cont [3/8] %v1527, 128
        %1550 = vxpose.xlu0.c.b16.cont [4/8] %v1529, 128
        %1551 = vxpose.xlu0.c.b16.cont [5/8] 0, 128
        %1552 = vxpose.xlu0.c.b16.cont [6/8] 0, 128
        %1553 = vxpose.xlu0.c.b16.cont [7/8] 0, 128
        %1554 = vxpose.xlu0.c.b16.end [8/8] 0, 128
        %v1555 = vpop.trf.xlu0
        %v1556 = vpop.trf.xlu0
        %v1557 = vpop.trf.xlu0
        %v1558 = vpop.trf.xlu0
        %v1559 = vpop.trf.xlu0
        %v1560 = vpop.trf.xlu0
        %v1561 = vpop.trf.xlu0
        %v1562 = vpop.trf.xlu0
        %1563 = vxpose.xlu0.c.b16.start [1/8] %v1524, 128
        %1564 = vxpose.xlu0.c.b16.cont [2/8] %v1526, 128
        %1565 = vxpose.xlu0.c.b16.cont [3/8] %v1528, 128
        %1566 = vxpose.xlu0.c.b16.cont [4/8] %v1530, 128
        %1567 = vxpose.xlu0.c.b16.cont [5/8] 0, 128
        %1568 = vxpose.xlu0.c.b16.cont [6/8] 0, 128
        %1569 = vxpose.xlu0.c.b16.cont [7/8] 0, 128
        %1570 = vxpose.xlu0.c.b16.end [8/8] 0, 128
        %v1571 = vpop.trf.xlu0
        %v1572 = vpop.trf.xlu0
        %v1573 = vpop.trf.xlu0
        %v1574 = vpop.trf.xlu0
        %v1575 = vpop.trf.xlu0
        %v1576 = vpop.trf.xlu0
        %v1577 = vpop.trf.xlu0
        %v1578 = vpop.trf.xlu0
        %v1580 = vsel %vm376, %v1555, 0
        %v1583 = vsel %vm376, %v1556, 0
        %v1586 = vsel %vm376, %v1557, 0
        %v1589 = vsel %vm376, %v1558, 0
        %v1592 = vsel %vm376, %v1559, 0
        %v1595 = vsel %vm376, %v1560, 0
        %v1598 = vsel %vm376, %v1561, 0
        %v1601 = vsel %vm376, %v1562, 0
        %v1604 = vsel %vm376, %v1571, 0
        %v1607 = vsel %vm376, %v1572, 0
        %v1610 = vsel %vm376, %v1573, 0
        %v1613 = vsel %vm376, %v1574, 0
        %v1616 = vsel %vm376, %v1575, 0
        %v1619 = vsel %vm376, %v1576, 0
        %v1622 = vsel %vm376, %v1577, 0
        %v1625 = vsel %vm376, %v1578, 0
        %1627 = vmatprep.subr.bf16.mxu0 0
        %1628 = vmatpush1.bf16.msra.mxu0 0
        %1629 = vmatprep.subr.bf16.mxu0 0
        %1630 = vmatpush1.bf16.msra.mxu0 0
        %1631 = vmatprep.subr.bf16.mxu0 0
        %1632 = vmatpush1.bf16.msra.mxu0 0
        %1633 = vmatprep.subr.bf16.mxu0 0
        %1634 = vmatpush1.bf16.msra.mxu0 0
        %1635 = vmatprep.subr.bf16.mxu0 %v1538
        %1636 = vmatpush1.bf16.msra.mxu0 %v1537
        %1637 = vmatprep.subr.bf16.mxu0 %v1536
        %1638 = vmatpush1.bf16.msra.mxu0 %v1535
        %1639 = vmatprep.subr.bf16.mxu0 %v1534
        %1640 = vmatpush1.bf16.msra.mxu0 %v1533
        %1641 = vmatprep.subr.bf16.mxu0 %v1532
        %1642 = vmatpush1.bf16.msra.mxu0 %v1531
        %1643 = vmatprep.subr.bf16.mxu0 0
        %1644 = vmatpush2.bf16.msra.mxu0 0
        %1645 = vmatprep.subr.bf16.mxu0 0
        %1646 = vmatpush2.bf16.msra.mxu0 0
        %1647 = vmatprep.subr.bf16.mxu0 0
        %1648 = vmatpush2.bf16.msra.mxu0 0
        %1649 = vmatprep.subr.bf16.mxu0 0
        %1650 = vmatpush2.bf16.msra.mxu0 0
        %1651 = vmatprep.subr.bf16.mxu0 0
        %1652 = vmatpush2.bf16.msra.mxu0 0
        %1653 = vmatprep.subr.bf16.mxu0 0
        %1654 = vmatpush2.bf16.msra.mxu0 0
        %1655 = vmatprep.subr.bf16.mxu0 0
        %1656 = vmatpush2.bf16.msra.mxu0 0
        %1657 = vmatprep.subr.bf16.mxu0 0
        %1658 = vmatpush2.bf16.msra.mxu0 0
        %1659 = vmatprep.mubr.bf16.mxu0 0
        %1660 = vmatmul.mubr.bf16.gmra.mxu0 %v1580
        %v1661 = vpop.f32.mrf.mxu0
        %v1662 = vadd.f32 0.0, %v1661
        %v1663 = vpop.f32.mrf.mxu0
        %v1664 = vadd.f32 0.0, %v1663
        %v1665 = vpop.f32.mrf.mxu0
        %v1666 = vadd.f32 0.0, %v1665
        %v1667 = vpop.f32.mrf.mxu0
        %v1668 = vadd.f32 0.0, %v1667
        %1669 = vmatprep.mubr.bf16.mxu0 0
        %1670 = vmatmul.mubr.bf16.gmra.mxu0 %v1583
        %v1671 = vpop.f32.mrf.mxu0
        %v1672 = vadd.f32 0.0, %v1671
        %v1673 = vpop.f32.mrf.mxu0
        %v1674 = vadd.f32 0.0, %v1673
        %v1675 = vpop.f32.mrf.mxu0
        %v1676 = vadd.f32 0.0, %v1675
        %v1677 = vpop.f32.mrf.mxu0
        %v1678 = vadd.f32 0.0, %v1677
        %1679 = vmatprep.mubr.bf16.mxu0 0
        %1680 = vmatmul.mubr.bf16.gmra.mxu0 %v1586
        %v1681 = vpop.f32.mrf.mxu0
        %v1682 = vadd.f32 0.0, %v1681
        %v1683 = vpop.f32.mrf.mxu0
        %v1684 = vadd.f32 0.0, %v1683
        %v1685 = vpop.f32.mrf.mxu0
        %v1686 = vadd.f32 0.0, %v1685
        %v1687 = vpop.f32.mrf.mxu0
        %v1688 = vadd.f32 0.0, %v1687
        %1689 = vmatprep.mubr.bf16.mxu0 0
        %1690 = vmatmul.mubr.bf16.gmra.mxu0 %v1589
        %v1691 = vpop.f32.mrf.mxu0
        %v1692 = vadd.f32 0.0, %v1691
        %v1693 = vpop.f32.mrf.mxu0
        %v1694 = vadd.f32 0.0, %v1693
        %v1695 = vpop.f32.mrf.mxu0
        %v1696 = vadd.f32 0.0, %v1695
        %v1697 = vpop.f32.mrf.mxu0
        %v1698 = vadd.f32 0.0, %v1697
        %1699 = vmatprep.mubr.bf16.mxu0 0
        %1700 = vmatmul.mubr.bf16.gmra.mxu0 %v1592
        %v1701 = vpop.f32.mrf.mxu0
        %v1702 = vadd.f32 0.0, %v1701
        %v1703 = vpop.f32.mrf.mxu0
        %v1704 = vadd.f32 0.0, %v1703
        %v1705 = vpop.f32.mrf.mxu0
        %v1706 = vadd.f32 0.0, %v1705
        %v1707 = vpop.f32.mrf.mxu0
        %v1708 = vadd.f32 0.0, %v1707
        %1709 = vmatprep.mubr.bf16.mxu0 0
        %1710 = vmatmul.mubr.bf16.gmra.mxu0 %v1595
        %v1711 = vpop.f32.mrf.mxu0
        %v1712 = vadd.f32 0.0, %v1711
        %v1713 = vpop.f32.mrf.mxu0
        %v1714 = vadd.f32 0.0, %v1713
        %v1715 = vpop.f32.mrf.mxu0
        %v1716 = vadd.f32 0.0, %v1715
        %v1717 = vpop.f32.mrf.mxu0
        %v1718 = vadd.f32 0.0, %v1717
        %1719 = vmatprep.mubr.bf16.mxu0 0
        %1720 = vmatmul.mubr.bf16.gmra.mxu0 %v1598
        %v1721 = vpop.f32.mrf.mxu0
        %v1722 = vadd.f32 0.0, %v1721
        %v1723 = vpop.f32.mrf.mxu0
        %v1724 = vadd.f32 0.0, %v1723
        %v1725 = vpop.f32.mrf.mxu0
        %v1726 = vadd.f32 0.0, %v1725
        %v1727 = vpop.f32.mrf.mxu0
        %v1728 = vadd.f32 0.0, %v1727
        %1729 = vmatprep.mubr.bf16.mxu0 0
        %1730 = vmatmul.mubr.bf16.gmra.mxu0 %v1601
        %v1731 = vpop.f32.mrf.mxu0
        %v1732 = vadd.f32 0.0, %v1731
        %v1733 = vpop.f32.mrf.mxu0
        %v1734 = vadd.f32 0.0, %v1733
        %v1735 = vpop.f32.mrf.mxu0
        %v1736 = vadd.f32 0.0, %v1735
        %v1737 = vpop.f32.mrf.mxu0
        %v1738 = vadd.f32 0.0, %v1737
        %1739 = vmatprep.mubr.bf16.mxu0 0
        %1740 = vmatmul.mubr.bf16.gmra.mxu0 %v1604
        %v1741 = vpop.f32.mrf.mxu0
        %v1742 = vadd.f32 0.0, %v1741
        %v1743 = vpop.f32.mrf.mxu0
        %v1744 = vadd.f32 0.0, %v1743
        %v1745 = vpop.f32.mrf.mxu0
        %v1746 = vadd.f32 0.0, %v1745
        %v1747 = vpop.f32.mrf.mxu0
        %v1748 = vadd.f32 0.0, %v1747
        %1749 = vmatprep.mubr.bf16.mxu0 0
        %1750 = vmatmul.mubr.bf16.gmra.mxu0 %v1607
        %v1751 = vpop.f32.mrf.mxu0
        %v1752 = vadd.f32 0.0, %v1751
        %v1753 = vpop.f32.mrf.mxu0
        %v1754 = vadd.f32 0.0, %v1753
        %v1755 = vpop.f32.mrf.mxu0
        %v1756 = vadd.f32 0.0, %v1755
        %v1757 = vpop.f32.mrf.mxu0
        %v1758 = vadd.f32 0.0, %v1757
        %1759 = vmatprep.mubr.bf16.mxu0 0
        %1760 = vmatmul.mubr.bf16.gmra.mxu0 %v1610
        %v1761 = vpop.f32.mrf.mxu0
        %v1762 = vadd.f32 0.0, %v1761
        %v1763 = vpop.f32.mrf.mxu0
        %v1764 = vadd.f32 0.0, %v1763
        %v1765 = vpop.f32.mrf.mxu0
        %v1766 = vadd.f32 0.0, %v1765
        %v1767 = vpop.f32.mrf.mxu0
        %v1768 = vadd.f32 0.0, %v1767
        %1769 = vmatprep.mubr.bf16.mxu0 0
        %1770 = vmatmul.mubr.bf16.gmra.mxu0 %v1613
        %v1771 = vpop.f32.mrf.mxu0
        %v1772 = vadd.f32 0.0, %v1771
        %v1773 = vpop.f32.mrf.mxu0
        %v1774 = vadd.f32 0.0, %v1773
        %v1775 = vpop.f32.mrf.mxu0
        %v1776 = vadd.f32 0.0, %v1775
        %v1777 = vpop.f32.mrf.mxu0
        %v1778 = vadd.f32 0.0, %v1777
        %1779 = vmatprep.mubr.bf16.mxu0 0
        %1780 = vmatmul.mubr.bf16.gmra.mxu0 %v1616
        %v1781 = vpop.f32.mrf.mxu0
        %v1782 = vadd.f32 0.0, %v1781
        %v1783 = vpop.f32.mrf.mxu0
        %v1784 = vadd.f32 0.0, %v1783
        %v1785 = vpop.f32.mrf.mxu0
        %v1786 = vadd.f32 0.0, %v1785
        %v1787 = vpop.f32.mrf.mxu0
        %v1788 = vadd.f32 0.0, %v1787
        %1789 = vmatprep.mubr.bf16.mxu0 0
        %1790 = vmatmul.mubr.bf16.gmra.mxu0 %v1619
        %v1791 = vpop.f32.mrf.mxu0
        %v1792 = vadd.f32 0.0, %v1791
        %v1793 = vpop.f32.mrf.mxu0
        %v1794 = vadd.f32 0.0, %v1793
        %v1795 = vpop.f32.mrf.mxu0
        %v1796 = vadd.f32 0.0, %v1795
        %v1797 = vpop.f32.mrf.mxu0
        %v1798 = vadd.f32 0.0, %v1797
        %1799 = vmatprep.mubr.bf16.mxu0 0
        %1800 = vmatmul.mubr.bf16.gmra.mxu0 %v1622
        %v1801 = vpop.f32.mrf.mxu0
        %v1802 = vadd.f32 0.0, %v1801
        %v1803 = vpop.f32.mrf.mxu0
        %v1804 = vadd.f32 0.0, %v1803
        %v1805 = vpop.f32.mrf.mxu0
        %v1806 = vadd.f32 0.0, %v1805
        %v1807 = vpop.f32.mrf.mxu0
        %v1808 = vadd.f32 0.0, %v1807
        %1809 = vmatprep.mubr.bf16.mxu0 0
        %1810 = vmatmul.mubr.bf16.gmra.mxu0 %v1625
        %v1811 = vpop.f32.mrf.mxu0
        %v1812 = vadd.f32 0.0, %v1811
        %v1813 = vpop.f32.mrf.mxu0
        %v1814 = vadd.f32 0.0, %v1813
        %v1815 = vpop.f32.mrf.mxu0
        %v1816 = vadd.f32 0.0, %v1815
        %v1817 = vpop.f32.mrf.mxu0
        %v1818 = vadd.f32 0.0, %v1817
        %1819 = vdwg.mxu0
        %v1820 = vmax.f32 %v1662, %v1664
        %1821 = vmax.xlane.f32.xlu0 %v1820
        %v1822 = vpop.xlane.xlu0 %1821
        %v1823 = vmax.f32 %v1666, %v1668
        %1824 = vmax.xlane.f32.xlu0 %v1823
        %v1825 = vpop.xlane.xlu0 %1824
        %v1826 = vmax.f32 %v1672, %v1674
        %1827 = vmax.xlane.f32.xlu0 %v1826
        %v1828 = vpop.xlane.xlu0 %1827
        %v1829 = vmax.f32 %v1676, %v1678
        %1830 = vmax.xlane.f32.xlu0 %v1829
        %v1831 = vpop.xlane.xlu0 %1830
        %v1832 = vmax.f32 %v1682, %v1684
        %1833 = vmax.xlane.f32.xlu0 %v1832
        %v1834 = vpop.xlane.xlu0 %1833
        %v1835 = vmax.f32 %v1686, %v1688
        %1836 = vmax.xlane.f32.xlu0 %v1835
        %v1837 = vpop.xlane.xlu0 %1836
        %v1838 = vmax.f32 %v1692, %v1694
        %1839 = vmax.xlane.f32.xlu0 %v1838
        %v1840 = vpop.xlane.xlu0 %1839
        %v1841 = vmax.f32 %v1696, %v1698
        %1842 = vmax.xlane.f32.xlu0 %v1841
        %v1843 = vpop.xlane.xlu0 %1842
        %v1844 = vmax.f32 %v1702, %v1704
        %1845 = vmax.xlane.f32.xlu0 %v1844
        %v1846 = vpop.xlane.xlu0 %1845
        %v1847 = vmax.f32 %v1706, %v1708
        %1848 = vmax.xlane.f32.xlu0 %v1847
        %v1849 = vpop.xlane.xlu0 %1848
        %v1850 = vmax.f32 %v1712, %v1714
        %1851 = vmax.xlane.f32.xlu0 %v1850
        %v1852 = vpop.xlane.xlu0 %1851
        %v1853 = vmax.f32 %v1716, %v1718
        %1854 = vmax.xlane.f32.xlu0 %v1853
        %v1855 = vpop.xlane.xlu0 %1854
        %v1856 = vmax.f32 %v1722, %v1724
        %1857 = vmax.xlane.f32.xlu0 %v1856
        %v1858 = vpop.xlane.xlu0 %1857
        %v1859 = vmax.f32 %v1726, %v1728
        %1860 = vmax.xlane.f32.xlu0 %v1859
        %v1861 = vpop.xlane.xlu0 %1860
        %v1862 = vmax.f32 %v1732, %v1734
        %1863 = vmax.xlane.f32.xlu0 %v1862
        %v1864 = vpop.xlane.xlu0 %1863
        %v1865 = vmax.f32 %v1736, %v1738
        %1866 = vmax.xlane.f32.xlu0 %v1865
        %v1867 = vpop.xlane.xlu0 %1866
        %v1868 = vmax.f32 %v1742, %v1744
        %1869 = vmax.xlane.f32.xlu0 %v1868
        %v1870 = vpop.xlane.xlu0 %1869
        %v1871 = vmax.f32 %v1746, %v1748
        %1872 = vmax.xlane.f32.xlu0 %v1871
        %v1873 = vpop.xlane.xlu0 %1872
        %v1874 = vmax.f32 %v1752, %v1754
        %1875 = vmax.xlane.f32.xlu0 %v1874
        %v1876 = vpop.xlane.xlu0 %1875
        %v1877 = vmax.f32 %v1756, %v1758
        %1878 = vmax.xlane.f32.xlu0 %v1877
        %v1879 = vpop.xlane.xlu0 %1878
        %v1880 = vmax.f32 %v1762, %v1764
        %1881 = vmax.xlane.f32.xlu0 %v1880
        %v1882 = vpop.xlane.xlu0 %1881
        %v1883 = vmax.f32 %v1766, %v1768
        %1884 = vmax.xlane.f32.xlu0 %v1883
        %v1885 = vpop.xlane.xlu0 %1884
        %v1886 = vmax.f32 %v1772, %v1774
        %1887 = vmax.xlane.f32.xlu0 %v1886
        %v1888 = vpop.xlane.xlu0 %1887
        %v1889 = vmax.f32 %v1776, %v1778
        %1890 = vmax.xlane.f32.xlu0 %v1889
        %v1891 = vpop.xlane.xlu0 %1890
        %v1892 = vmax.f32 %v1782, %v1784
        %1893 = vmax.xlane.f32.xlu0 %v1892
        %v1894 = vpop.xlane.xlu0 %1893
        %v1895 = vmax.f32 %v1786, %v1788
        %1896 = vmax.xlane.f32.xlu0 %v1895
        %v1897 = vpop.xlane.xlu0 %1896
        %v1898 = vmax.f32 %v1792, %v1794
        %1899 = vmax.xlane.f32.xlu0 %v1898
        %v1900 = vpop.xlane.xlu0 %1899
        %v1901 = vmax.f32 %v1796, %v1798
        %1902 = vmax.xlane.f32.xlu0 %v1901
        %v1903 = vpop.xlane.xlu0 %1902
        %v1904 = vmax.f32 %v1802, %v1804
        %1905 = vmax.xlane.f32.xlu0 %v1904
        %v1906 = vpop.xlane.xlu0 %1905
        %v1907 = vmax.f32 %v1806, %v1808
        %1908 = vmax.xlane.f32.xlu0 %v1907
        %v1909 = vpop.xlane.xlu0 %1908
        %v1910 = vmax.f32 %v1812, %v1814
        %1911 = vmax.xlane.f32.xlu0 %v1910
        %v1912 = vpop.xlane.xlu0 %1911
        %v1913 = vmax.f32 %v1816, %v1818
        %1914 = vmax.xlane.f32.xlu0 %v1913
        %v1915 = vpop.xlane.xlu0 %1914
        %v1916 = vsub.f32 %v1662, %v1822
        %v1917 = vsub.f32 %v1664, %v1822
        %v1918 = vsub.f32 %v1666, %v1825
        %v1919 = vsub.f32 %v1668, %v1825
        %v1920 = vsub.f32 %v1672, %v1828
        %v1921 = vsub.f32 %v1674, %v1828
        %v1922 = vsub.f32 %v1676, %v1831
        %v1923 = vsub.f32 %v1678, %v1831
        %v1924 = vsub.f32 %v1682, %v1834
        %v1925 = vsub.f32 %v1684, %v1834
        %v1926 = vsub.f32 %v1686, %v1837
        %v1927 = vsub.f32 %v1688, %v1837
        %v1928 = vsub.f32 %v1692, %v1840
        %v1929 = vsub.f32 %v1694, %v1840
        %v1930 = vsub.f32 %v1696, %v1843
        %v1931 = vsub.f32 %v1698, %v1843
        %v1932 = vsub.f32 %v1702, %v1846
        %v1933 = vsub.f32 %v1704, %v1846
        %v1934 = vsub.f32 %v1706, %v1849
        %v1935 = vsub.f32 %v1708, %v1849
        %v1936 = vsub.f32 %v1712, %v1852
        %v1937 = vsub.f32 %v1714, %v1852
        %v1938 = vsub.f32 %v1716, %v1855
        %v1939 = vsub.f32 %v1718, %v1855
        %v1940 = vsub.f32 %v1722, %v1858
        %v1941 = vsub.f32 %v1724, %v1858
        %v1942 = vsub.f32 %v1726, %v1861
        %v1943 = vsub.f32 %v1728, %v1861
        %v1944 = vsub.f32 %v1732, %v1864
        %v1945 = vsub.f32 %v1734, %v1864
        %v1946 = vsub.f32 %v1736, %v1867
        %v1947 = vsub.f32 %v1738, %v1867
        %v1948 = vsub.f32 %v1742, %v1870
        %v1949 = vsub.f32 %v1744, %v1870
        %v1950 = vsub.f32 %v1746, %v1873
        %v1951 = vsub.f32 %v1748, %v1873
        %v1952 = vsub.f32 %v1752, %v1876
        %v1953 = vsub.f32 %v1754, %v1876
        %v1954 = vsub.f32 %v1756, %v1879
        %v1955 = vsub.f32 %v1758, %v1879
        %v1956 = vsub.f32 %v1762, %v1882
        %v1957 = vsub.f32 %v1764, %v1882
        %v1958 = vsub.f32 %v1766, %v1885
        %v1959 = vsub.f32 %v1768, %v1885
        %v1960 = vsub.f32 %v1772, %v1888
        %v1961 = vsub.f32 %v1774, %v1888
        %v1962 = vsub.f32 %v1776, %v1891
        %v1963 = vsub.f32 %v1778, %v1891
        %v1964 = vsub.f32 %v1782, %v1894
        %v1965 = vsub.f32 %v1784, %v1894
        %v1966 = vsub.f32 %v1786, %v1897
        %v1967 = vsub.f32 %v1788, %v1897
        %v1968 = vsub.f32 %v1792, %v1900
        %v1969 = vsub.f32 %v1794, %v1900
        %v1970 = vsub.f32 %v1796, %v1903
        %v1971 = vsub.f32 %v1798, %v1903
        %v1972 = vsub.f32 %v1802, %v1906
        %v1973 = vsub.f32 %v1804, %v1906
        %v1974 = vsub.f32 %v1806, %v1909
        %v1975 = vsub.f32 %v1808, %v1909
        %v1976 = vsub.f32 %v1812, %v1912
        %v1977 = vsub.f32 %v1814, %v1912
        %v1978 = vsub.f32 %v1816, %v1915
        %v1979 = vsub.f32 %v1818, %v1915
        %v1980 = vmul.f32 %v1916, 1.442695
        %v1981 = vpow.pop %v1980
        %v1982 = vmul.f32 %v1917, 1.442695
        %v1983 = vpow.pop %v1982
        %v1984 = vmul.f32 %v1918, 1.442695
        %v1985 = vpow.pop %v1984
        %v1986 = vmul.f32 %v1919, 1.442695
        %v1987 = vpow.pop %v1986
        %v1988 = vmul.f32 %v1920, 1.442695
        %v1989 = vpow.pop %v1988
        %v1990 = vmul.f32 %v1921, 1.442695
        %v1991 = vpow.pop %v1990
        %v1992 = vmul.f32 %v1922, 1.442695
        %v1993 = vpow.pop %v1992
        %v1994 = vmul.f32 %v1923, 1.442695
        %v1995 = vpow.pop %v1994
        %v1996 = vmul.f32 %v1924, 1.442695
        %v1997 = vpow.pop %v1996
        %v1998 = vmul.f32 %v1925, 1.442695
        %v1999 = vpow.pop %v1998
        %v2000 = vmul.f32 %v1926, 1.442695
        %v2001 = vpow.pop %v2000
        %v2002 = vmul.f32 %v1927, 1.442695
        %v2003 = vpow.pop %v2002
        %v2004 = vmul.f32 %v1928, 1.442695
        %v2005 = vpow.pop %v2004
        %v2006 = vmul.f32 %v1929, 1.442695
        %v2007 = vpow.pop %v2006
        %v2008 = vmul.f32 %v1930, 1.442695
        %v2009 = vpow.pop %v2008
        %v2010 = vmul.f32 %v1931, 1.442695
        %v2011 = vpow.pop %v2010
        %v2012 = vmul.f32 %v1932, 1.442695
        %v2013 = vpow.pop %v2012
        %v2014 = vmul.f32 %v1933, 1.442695
        %v2015 = vpow.pop %v2014
        %v2016 = vmul.f32 %v1934, 1.442695
        %v2017 = vpow.pop %v2016
        %v2018 = vmul.f32 %v1935, 1.442695
        %v2019 = vpow.pop %v2018
        %v2020 = vmul.f32 %v1936, 1.442695
        %v2021 = vpow.pop %v2020
        %v2022 = vmul.f32 %v1937, 1.442695
        %v2023 = vpow.pop %v2022
        %v2024 = vmul.f32 %v1938, 1.442695
        %v2025 = vpow.pop %v2024
        %v2026 = vmul.f32 %v1939, 1.442695
        %v2027 = vpow.pop %v2026
        %v2028 = vmul.f32 %v1940, 1.442695
        %v2029 = vpow.pop %v2028
        %v2030 = vmul.f32 %v1941, 1.442695
        %v2031 = vpow.pop %v2030
        %v2032 = vmul.f32 %v1942, 1.442695
        %v2033 = vpow.pop %v2032
        %v2034 = vmul.f32 %v1943, 1.442695
        %v2035 = vpow.pop %v2034
        %v2036 = vmul.f32 %v1944, 1.442695
        %v2037 = vpow.pop %v2036
        %v2038 = vmul.f32 %v1945, 1.442695
        %v2039 = vpow.pop %v2038
        %v2040 = vmul.f32 %v1946, 1.442695
        %v2041 = vpow.pop %v2040
        %v2042 = vmul.f32 %v1947, 1.442695
        %v2043 = vpow.pop %v2042
        %v2044 = vmul.f32 %v1948, 1.442695
        %v2045 = vpow.pop %v2044
        %v2046 = vmul.f32 %v1949, 1.442695
        %v2047 = vpow.pop %v2046
        %v2048 = vmul.f32 %v1950, 1.442695
        %v2049 = vpow.pop %v2048
        %v2050 = vmul.f32 %v1951, 1.442695
        %v2051 = vpow.pop %v2050
        %v2052 = vmul.f32 %v1952, 1.442695
        %v2053 = vpow.pop %v2052
        %v2054 = vmul.f32 %v1953, 1.442695
        %v2055 = vpow.pop %v2054
        %v2056 = vmul.f32 %v1954, 1.442695
        %v2057 = vpow.pop %v2056
        %v2058 = vmul.f32 %v1955, 1.442695
        %v2059 = vpow.pop %v2058
        %v2060 = vmul.f32 %v1956, 1.442695
        %v2061 = vpow.pop %v2060
        %v2062 = vmul.f32 %v1957, 1.442695
        %v2063 = vpow.pop %v2062
        %v2064 = vmul.f32 %v1958, 1.442695
        %v2065 = vpow.pop %v2064
        %v2066 = vmul.f32 %v1959, 1.442695
        %v2067 = vpow.pop %v2066
        %v2068 = vmul.f32 %v1960, 1.442695
        %v2069 = vpow.pop %v2068
        %v2070 = vmul.f32 %v1961, 1.442695
        %v2071 = vpow.pop %v2070
        %v2072 = vmul.f32 %v1962, 1.442695
        %v2073 = vpow.pop %v2072
        %v2074 = vmul.f32 %v1963, 1.442695
        %v2075 = vpow.pop %v2074
        %v2076 = vmul.f32 %v1964, 1.442695
        %v2077 = vpow.pop %v2076
        %v2078 = vmul.f32 %v1965, 1.442695
        %v2079 = vpow.pop %v2078
        %v2080 = vmul.f32 %v1966, 1.442695
        %v2081 = vpow.pop %v2080
        %v2082 = vmul.f32 %v1967, 1.442695
        %v2083 = vpow.pop %v2082
        %v2084 = vmul.f32 %v1968, 1.442695
        %v2085 = vpow.pop %v2084
        %v2086 = vmul.f32 %v1969, 1.442695
        %v2087 = vpow.pop %v2086
        %v2088 = vmul.f32 %v1970, 1.442695
        %v2089 = vpow.pop %v2088
        %v2090 = vmul.f32 %v1971, 1.442695
        %v2091 = vpow.pop %v2090
        %v2092 = vmul.f32 %v1972, 1.442695
        %v2093 = vpow.pop %v2092
        %v2094 = vmul.f32 %v1973, 1.442695
        %v2095 = vpow.pop %v2094
        %v2096 = vmul.f32 %v1974, 1.442695
        %v2097 = vpow.pop %v2096
        %v2098 = vmul.f32 %v1975, 1.442695
        %v2099 = vpow.pop %v2098
        %v2100 = vmul.f32 %v1976, 1.442695
        %v2101 = vpow.pop %v2100
        %v2102 = vmul.f32 %v1977, 1.442695
        %v2103 = vpow.pop %v2102
        %v2104 = vmul.f32 %v1978, 1.442695
        %v2105 = vpow.pop %v2104
        %v2106 = vmul.f32 %v1979, 1.442695
        %v2107 = vpow.pop %v2106
        %v2108 = vadd.f32 %v1981, %v1983
        %2109 = vadd.xlane.f32.xlu0 %v2108
        %v2110 = vpop.xlane.xlu0 %2109
        %v2111 = vadd.f32 %v1985, %v1987
        %2112 = vadd.xlane.f32.xlu0 %v2111
        %v2113 = vpop.xlane.xlu0 %2112
        %v2114 = vadd.f32 %v1989, %v1991
        %2115 = vadd.xlane.f32.xlu0 %v2114
        %v2116 = vpop.xlane.xlu0 %2115
        %v2117 = vadd.f32 %v1993, %v1995
        %2118 = vadd.xlane.f32.xlu0 %v2117
        %v2119 = vpop.xlane.xlu0 %2118
        %v2120 = vadd.f32 %v1997, %v1999
        %2121 = vadd.xlane.f32.xlu0 %v2120
        %v2122 = vpop.xlane.xlu0 %2121
        %v2123 = vadd.f32 %v2001, %v2003
        %2124 = vadd.xlane.f32.xlu0 %v2123
        %v2125 = vpop.xlane.xlu0 %2124
        %v2126 = vadd.f32 %v2005, %v2007
        %2127 = vadd.xlane.f32.xlu0 %v2126
        %v2128 = vpop.xlane.xlu0 %2127
        %v2129 = vadd.f32 %v2009, %v2011
        %2130 = vadd.xlane.f32.xlu0 %v2129
        %v2131 = vpop.xlane.xlu0 %2130
        %v2132 = vadd.f32 %v2013, %v2015
        %2133 = vadd.xlane.f32.xlu0 %v2132
        %v2134 = vpop.xlane.xlu0 %2133
        %v2135 = vadd.f32 %v2017, %v2019
        %2136 = vadd.xlane.f32.xlu0 %v2135
        %v2137 = vpop.xlane.xlu0 %2136
        %v2138 = vadd.f32 %v2021, %v2023
        %2139 = vadd.xlane.f32.xlu0 %v2138
        %v2140 = vpop.xlane.xlu0 %2139
        %v2141 = vadd.f32 %v2025, %v2027
        %2142 = vadd.xlane.f32.xlu0 %v2141
        %v2143 = vpop.xlane.xlu0 %2142
        %v2144 = vadd.f32 %v2029, %v2031
        %2145 = vadd.xlane.f32.xlu0 %v2144
        %v2146 = vpop.xlane.xlu0 %2145
        %v2147 = vadd.f32 %v2033, %v2035
        %2148 = vadd.xlane.f32.xlu0 %v2147
        %v2149 = vpop.xlane.xlu0 %2148
        %v2150 = vadd.f32 %v2037, %v2039
        %2151 = vadd.xlane.f32.xlu0 %v2150
        %v2152 = vpop.xlane.xlu0 %2151
        %v2153 = vadd.f32 %v2041, %v2043
        %2154 = vadd.xlane.f32.xlu0 %v2153
        %v2155 = vpop.xlane.xlu0 %2154
        %v2156 = vadd.f32 %v2045, %v2047
        %2157 = vadd.xlane.f32.xlu0 %v2156
        %v2158 = vpop.xlane.xlu0 %2157
        %v2159 = vadd.f32 %v2049, %v2051
        %2160 = vadd.xlane.f32.xlu0 %v2159
        %v2161 = vpop.xlane.xlu0 %2160
        %v2162 = vadd.f32 %v2053, %v2055
        %2163 = vadd.xlane.f32.xlu0 %v2162
        %v2164 = vpop.xlane.xlu0 %2163
        %v2165 = vadd.f32 %v2057, %v2059
        %2166 = vadd.xlane.f32.xlu0 %v2165
        %v2167 = vpop.xlane.xlu0 %2166
        %v2168 = vadd.f32 %v2061, %v2063
        %2169 = vadd.xlane.f32.xlu0 %v2168
        %v2170 = vpop.xlane.xlu0 %2169
        %v2171 = vadd.f32 %v2065, %v2067
        %2172 = vadd.xlane.f32.xlu0 %v2171
        %v2173 = vpop.xlane.xlu0 %2172
        %v2174 = vadd.f32 %v2069, %v2071
        %2175 = vadd.xlane.f32.xlu0 %v2174
        %v2176 = vpop.xlane.xlu0 %2175
        %v2177 = vadd.f32 %v2073, %v2075
        %2178 = vadd.xlane.f32.xlu0 %v2177
        %v2179 = vpop.xlane.xlu0 %2178
        %v2180 = vadd.f32 %v2077, %v2079
        %2181 = vadd.xlane.f32.xlu0 %v2180
        %v2182 = vpop.xlane.xlu0 %2181
        %v2183 = vadd.f32 %v2081, %v2083
        %2184 = vadd.xlane.f32.xlu0 %v2183
        %v2185 = vpop.xlane.xlu0 %2184
        %v2186 = vadd.f32 %v2085, %v2087
        %2187 = vadd.xlane.f32.xlu0 %v2186
        %v2188 = vpop.xlane.xlu0 %2187
        %v2189 = vadd.f32 %v2089, %v2091
        %2190 = vadd.xlane.f32.xlu0 %v2189
        %v2191 = vpop.xlane.xlu0 %2190
        %v2192 = vadd.f32 %v2093, %v2095
        %2193 = vadd.xlane.f32.xlu0 %v2192
        %v2194 = vpop.xlane.xlu0 %2193
        %v2195 = vadd.f32 %v2097, %v2099
        %2196 = vadd.xlane.f32.xlu0 %v2195
        %v2197 = vpop.xlane.xlu0 %2196
        %v2198 = vadd.f32 %v2101, %v2103
        %2199 = vadd.xlane.f32.xlu0 %v2198
        %v2200 = vpop.xlane.xlu0 %2199
        %v2201 = vadd.f32 %v2105, %v2107
        %2202 = vadd.xlane.f32.xlu0 %v2201
        %v2203 = vpop.xlane.xlu0 %2202
        %v2204 = vrcp.pop %v2110
        %v2205 = vrcp.pop %v2113
        %v2206 = vrcp.pop %v2116
        %v2207 = vrcp.pop %v2119
        %v2208 = vrcp.pop %v2122
        %v2209 = vrcp.pop %v2125
        %v2210 = vrcp.pop %v2128
        %v2211 = vrcp.pop %v2131
        %v2212 = vrcp.pop %v2134
        %v2213 = vrcp.pop %v2137
        %v2214 = vrcp.pop %v2140
        %v2215 = vrcp.pop %v2143
        %v2216 = vrcp.pop %v2146
        %v2217 = vrcp.pop %v2149
        %v2218 = vrcp.pop %v2152
        %v2219 = vrcp.pop %v2155
        %v2220 = vrcp.pop %v2158
        %v2221 = vrcp.pop %v2161
        %v2222 = vrcp.pop %v2164
        %v2223 = vrcp.pop %v2167
        %v2224 = vrcp.pop %v2170
        %v2225 = vrcp.pop %v2173
        %v2226 = vrcp.pop %v2176
        %v2227 = vrcp.pop %v2179
        %v2228 = vrcp.pop %v2182
        %v2229 = vrcp.pop %v2185
        %v2230 = vrcp.pop %v2188
        %v2231 = vrcp.pop %v2191
        %v2232 = vrcp.pop %v2194
        %v2233 = vrcp.pop %v2197
        %v2234 = vrcp.pop %v2200
        %v2235 = vrcp.pop %v2203
        %v2236 = vmul.f32 %v1981, %v2204
        %v2237 = vmul.f32 %v1983, %v2204
        %v2238 = vmul.f32 %v1985, %v2205
        %v2239 = vmul.f32 %v1987, %v2205
        %v2240 = vmul.f32 %v1989, %v2206
        %v2241 = vmul.f32 %v1991, %v2206
        %v2242 = vmul.f32 %v1993, %v2207
        %v2243 = vmul.f32 %v1995, %v2207
        %v2244 = vmul.f32 %v1997, %v2208
        %v2245 = vmul.f32 %v1999, %v2208
        %v2246 = vmul.f32 %v2001, %v2209
        %v2247 = vmul.f32 %v2003, %v2209
        %v2248 = vmul.f32 %v2005, %v2210
        %v2249 = vmul.f32 %v2007, %v2210
        %v2250 = vmul.f32 %v2009, %v2211
        %v2251 = vmul.f32 %v2011, %v2211
        %v2252 = vmul.f32 %v2013, %v2212
        %v2253 = vmul.f32 %v2015, %v2212
        %v2254 = vmul.f32 %v2017, %v2213
        %v2255 = vmul.f32 %v2019, %v2213
        %v2256 = vmul.f32 %v2021, %v2214
        %v2257 = vmul.f32 %v2023, %v2214
        %v2258 = vmul.f32 %v2025, %v2215
        %v2259 = vmul.f32 %v2027, %v2215
        %v2260 = vmul.f32 %v2029, %v2216
        %v2261 = vmul.f32 %v2031, %v2216
        %v2262 = vmul.f32 %v2033, %v2217
        %v2263 = vmul.f32 %v2035, %v2217
        %v2264 = vmul.f32 %v2037, %v2218
        %v2265 = vmul.f32 %v2039, %v2218
        %v2266 = vmul.f32 %v2041, %v2219
        %v2267 = vmul.f32 %v2043, %v2219
        %v2268 = vmul.f32 %v2045, %v2220
        %v2269 = vmul.f32 %v2047, %v2220
        %v2270 = vmul.f32 %v2049, %v2221
        %v2271 = vmul.f32 %v2051, %v2221
        %v2272 = vmul.f32 %v2053, %v2222
        %v2273 = vmul.f32 %v2055, %v2222
        %v2274 = vmul.f32 %v2057, %v2223
        %v2275 = vmul.f32 %v2059, %v2223
        %v2276 = vmul.f32 %v2061, %v2224
        %v2277 = vmul.f32 %v2063, %v2224
        %v2278 = vmul.f32 %v2065, %v2225
        %v2279 = vmul.f32 %v2067, %v2225
        %v2280 = vmul.f32 %v2069, %v2226
        %v2281 = vmul.f32 %v2071, %v2226
        %v2282 = vmul.f32 %v2073, %v2227
        %v2283 = vmul.f32 %v2075, %v2227
        %v2284 = vmul.f32 %v2077, %v2228
        %v2285 = vmul.f32 %v2079, %v2228
        %v2286 = vmul.f32 %v2081, %v2229
        %v2287 = vmul.f32 %v2083, %v2229
        %v2288 = vmul.f32 %v2085, %v2230
        %v2289 = vmul.f32 %v2087, %v2230
        %v2290 = vmul.f32 %v2089, %v2231
        %v2291 = vmul.f32 %v2091, %v2231
        %v2292 = vmul.f32 %v2093, %v2232
        %v2293 = vmul.f32 %v2095, %v2232
        %v2294 = vmul.f32 %v2097, %v2233
        %v2295 = vmul.f32 %v2099, %v2233
        %v2296 = vmul.f32 %v2101, %v2234
        %v2297 = vmul.f32 %v2103, %v2234
        %v2298 = vmul.f32 %v2105, %v2235
        %v2299 = vmul.f32 %v2107, %v2235
        %v2300 = vpack.c.bf16 %v2238, %v2236
        %v2301 = vpack.c.bf16 %v2239, %v2237
        %v2302 = vpack.c.bf16 %v2242, %v2240
        %v2303 = vpack.c.bf16 %v2243, %v2241
        %v2304 = vpack.c.bf16 %v2246, %v2244
        %v2305 = vpack.c.bf16 %v2247, %v2245
        %v2306 = vpack.c.bf16 %v2250, %v2248
        %v2307 = vpack.c.bf16 %v2251, %v2249
        %v2308 = vpack.c.bf16 %v2254, %v2252
        %v2309 = vpack.c.bf16 %v2255, %v2253
        %v2310 = vpack.c.bf16 %v2258, %v2256
        %v2311 = vpack.c.bf16 %v2259, %v2257
        %v2312 = vpack.c.bf16 %v2262, %v2260
        %v2313 = vpack.c.bf16 %v2263, %v2261
        %v2314 = vpack.c.bf16 %v2266, %v2264
        %v2315 = vpack.c.bf16 %v2267, %v2265
        %v2316 = vpack.c.bf16 %v2270, %v2268
        %v2317 = vpack.c.bf16 %v2271, %v2269
        %v2318 = vpack.c.bf16 %v2274, %v2272
        %v2319 = vpack.c.bf16 %v2275, %v2273
        %v2320 = vpack.c.bf16 %v2278, %v2276
        %v2321 = vpack.c.bf16 %v2279, %v2277
        %v2322 = vpack.c.bf16 %v2282, %v2280
        %v2323 = vpack.c.bf16 %v2283, %v2281
        %v2324 = vpack.c.bf16 %v2286, %v2284
        %v2325 = vpack.c.bf16 %v2287, %v2285
        %v2326 = vpack.c.bf16 %v2290, %v2288
        %v2327 = vpack.c.bf16 %v2291, %v2289
        %v2328 = vpack.c.bf16 %v2294, %v2292
        %v2329 = vpack.c.bf16 %v2295, %v2293
        %v2330 = vpack.c.bf16 %v2298, %v2296
        %v2331 = vpack.c.bf16 %v2299, %v2297
        %2332 = vmatprep.subr.bf16.mxu0 %v2315
        %2333 = vmatpush1.bf16.xpose.msra.mxu0 %v2314
        %2334 = vmatprep.subr.bf16.mxu0 %v2313
        %2335 = vmatpush1.bf16.xpose.msra.mxu0 %v2312
        %2336 = vmatprep.subr.bf16.mxu0 %v2311
        %2337 = vmatpush1.bf16.xpose.msra.mxu0 %v2310
        %2338 = vmatprep.subr.bf16.mxu0 %v2309
        %2339 = vmatpush1.bf16.xpose.msra.mxu0 %v2308
        %2340 = vmatprep.subr.bf16.mxu0 %v2307
        %2341 = vmatpush1.bf16.xpose.msra.mxu0 %v2306
        %2342 = vmatprep.subr.bf16.mxu0 %v2305
        %2343 = vmatpush1.bf16.xpose.msra.mxu0 %v2304
        %2344 = vmatprep.subr.bf16.mxu0 %v2303
        %2345 = vmatpush1.bf16.xpose.msra.mxu0 %v2302
        %2346 = vmatprep.subr.bf16.mxu0 %v2301
        %2347 = vmatpush1.bf16.xpose.msra.mxu0 %v2300
        %2348 = vmatprep.subr.bf16.mxu0 %v2331
        %2349 = vmatpush2.bf16.xpose.msra.mxu0 %v2330
        %2350 = vmatprep.subr.bf16.mxu0 %v2329
        %2351 = vmatpush2.bf16.xpose.msra.mxu0 %v2328
        %2352 = vmatprep.subr.bf16.mxu0 %v2327
        %2353 = vmatpush2.bf16.xpose.msra.mxu0 %v2326
        %2354 = vmatprep.subr.bf16.mxu0 %v2325
        %2355 = vmatpush2.bf16.xpose.msra.mxu0 %v2324
        %2356 = vmatprep.subr.bf16.mxu0 %v2323
        %2357 = vmatpush2.bf16.xpose.msra.mxu0 %v2322
        %2358 = vmatprep.subr.bf16.mxu0 %v2321
        %2359 = vmatpush2.bf16.xpose.msra.mxu0 %v2320
        %2360 = vmatprep.subr.bf16.mxu0 %v2319
        %2361 = vmatpush2.bf16.xpose.msra.mxu0 %v2318
        %2362 = vmatprep.subr.bf16.mxu0 %v2317
        %2363 = vmatpush2.bf16.xpose.msra.mxu0 %v2316
        %2364 = vmatprep.mubr.bf16.mxu0 %v1540
        %2365 = vmatmul.mubr.bf16.gmra.mxu0 %v1539
        %v2366 = vpop.f32.mrf.mxu0
        %v2367 = vadd.f32 0.0, %v2366
        %v2368 = vpop.f32.mrf.mxu0
        %v2369 = vadd.f32 0.0, %v2368
        %v2370 = vpop.f32.mrf.mxu0
        %v2371 = vadd.f32 0.0, %v2370
        %v2372 = vpop.f32.mrf.mxu0
        %v2373 = vadd.f32 0.0, %v2372
        %2374 = vmatprep.mubr.bf16.mxu0 %v1542
        %2375 = vmatmul.mubr.bf16.gmra.mxu0 %v1541
        %v2376 = vpop.f32.mrf.mxu0
        %v2377 = vadd.f32 0.0, %v2376
        %v2378 = vpop.f32.mrf.mxu0
        %v2379 = vadd.f32 0.0, %v2378
        %v2380 = vpop.f32.mrf.mxu0
        %v2381 = vadd.f32 0.0, %v2380
        %v2382 = vpop.f32.mrf.mxu0
        %v2383 = vadd.f32 0.0, %v2382
        %2384 = vmatprep.mubr.bf16.mxu0 %v1544
        %2385 = vmatmul.mubr.bf16.gmra.mxu0 %v1543
        %v2386 = vpop.f32.mrf.mxu0
        %v2387 = vadd.f32 0.0, %v2386
        %v2388 = vpop.f32.mrf.mxu0
        %v2389 = vadd.f32 0.0, %v2388
        %v2390 = vpop.f32.mrf.mxu0
        %v2391 = vadd.f32 0.0, %v2390
        %v2392 = vpop.f32.mrf.mxu0
        %v2393 = vadd.f32 0.0, %v2392
        %2394 = vmatprep.mubr.bf16.mxu0 %v1546
        %2395 = vmatmul.mubr.bf16.gmra.mxu0 %v1545
        %v2396 = vpop.f32.mrf.mxu0
        %v2397 = vadd.f32 0.0, %v2396
        %v2398 = vpop.f32.mrf.mxu0
        %v2399 = vadd.f32 0.0, %v2398
        %v2400 = vpop.f32.mrf.mxu0
        %v2401 = vadd.f32 0.0, %v2400
        %v2402 = vpop.f32.mrf.mxu0
        %v2403 = vadd.f32 0.0, %v2402
        %2404 = vdwg.mxu0
        %v2405 = vld [vmem:[%s7] sm:$0xf]
        %v2406 = vld [vmem:[%s7 + $0x4] sm:$0xf]
        %v2407 = vld [vmem:[%s7 + $0x8] sm:$0xf]
        %v2408 = vld [vmem:[%s7 + $0xc] sm:$0xf]
        %v2409 = vld [vmem:[%s7 + $0x10] sm:$0xf]
        %v2410 = vld [vmem:[%s7 + $0x14] sm:$0xf]
        %v2411 = vld [vmem:[%s7 + $0x18] sm:$0xf]
        %v2412 = vld [vmem:[%s7 + $0x1c] sm:$0xf]
        %v2413 = vpack.c.bf16 %v2371, %v2367
        %v2414 = vpack.c.bf16 %v2373, %v2369
        %v2415 = vpack.c.bf16 %v2381, %v2377
        %v2416 = vpack.c.bf16 %v2383, %v2379
        %v2417 = vpack.c.bf16 %v2391, %v2387
        %v2418 = vpack.c.bf16 %v2393, %v2389
        %v2419 = vpack.c.bf16 %v2401, %v2397
        %v2420 = vpack.c.bf16 %v2403, %v2399
        %v2421 = vld [vmem:[%s8] sm:$0xff]
        %v2422 = vld [vmem:[%s8 + $0x8] sm:$0xff]
        %v2423 = vld [vmem:[%s8 + $0x10] sm:$0xff]
        %v2424 = vld [vmem:[%s8 + $0x18] sm:$0xff]
        %v2425 = vld [vmem:[%s8 + $0x20] sm:$0xff]
        %v2426 = vld [vmem:[%s8 + $0x28] sm:$0xff]
        %v2427 = vld [vmem:[%s8 + $0x30] sm:$0xff]
        %v2428 = vld [vmem:[%s8 + $0x38] sm:$0xff]
        %2430 = vset.pattern.permute.xlu0 0
        %2431 = vperm.xlu0 %2430, %v2421
        %v2432 = vpop.permute.xlu0 %2431
        %2435 = vset.pattern.permute.xlu0 0
        %2436 = vperm.xlu0 %2435, %v2422
        %v2437 = vpop.permute.xlu0 %2436
        %2440 = vset.pattern.permute.xlu0 0
        %2441 = vperm.xlu0 %2440, %v2423
        %v2442 = vpop.permute.xlu0 %2441
        %2445 = vset.pattern.permute.xlu0 0
        %2446 = vperm.xlu0 %2445, %v2424
        %v2447 = vpop.permute.xlu0 %2446
        %2450 = vset.pattern.permute.xlu0 0
        %2451 = vperm.xlu0 %2450, %v2425
        %v2452 = vpop.permute.xlu0 %2451
        %2455 = vset.pattern.permute.xlu0 0
        %2456 = vperm.xlu0 %2455, %v2426
        %v2457 = vpop.permute.xlu0 %2456
        %2460 = vset.pattern.permute.xlu0 0
        %2461 = vperm.xlu0 %2460, %v2427
        %v2462 = vpop.permute.xlu0 %2461
        %2465 = vset.pattern.permute.xlu0 0
        %2466 = vperm.xlu0 %2465, %v2428
        %v2467 = vpop.permute.xlu0 %2466
        %v2477 = vunpack.c.l.b16 %v2405
        %v2478 = vunpack.c.l.b16 %v2406
        %v2479 = vunpack.c.l.b16 %v2407
        %v2480 = vunpack.c.l.b16 %v2408
        %v2481 = vunpack.c.l.b16 %v2409
        %v2482 = vunpack.c.l.b16 %v2410
        %v2483 = vunpack.c.l.b16 %v2411
        %v2484 = vunpack.c.l.b16 %v2412
        %v2485 = vpack.c.b16 %v2478, %v2477
        %v2486 = vpack.c.b16 %v2480, %v2479
        %v2487 = vpack.c.b16 %v2482, %v2481
        %v2488 = vpack.c.b16 %v2484, %v2483
        %v2490 = vsel %vm376, %v2485, 0
        %v2493 = vsel %vm376, %v2486, 0
        %v2496 = vsel %vm376, %v2487, 0
        %v2499 = vsel %vm376, %v2488, 0
        %2501 = vmatprep.subr.bf16.mxu0 0
        %2502 = vmatpush1.bf16.msra.mxu0 0
        %2503 = vmatprep.subr.bf16.mxu0 0
        %2504 = vmatpush1.bf16.msra.mxu0 0
        %2505 = vmatprep.subr.bf16.mxu0 0
        %2506 = vmatpush1.bf16.msra.mxu0 0
        %2507 = vmatprep.subr.bf16.mxu0 0
        %2508 = vmatpush1.bf16.msra.mxu0 0
        %2509 = vmatprep.subr.bf16.mxu0 %v2420
        %2510 = vmatpush1.bf16.msra.mxu0 %v2419
        %2511 = vmatprep.subr.bf16.mxu0 %v2418
        %2512 = vmatpush1.bf16.msra.mxu0 %v2417
        %2513 = vmatprep.subr.bf16.mxu0 %v2416
        %2514 = vmatpush1.bf16.msra.mxu0 %v2415
        %2515 = vmatprep.subr.bf16.mxu0 %v2414
        %2516 = vmatpush1.bf16.msra.mxu0 %v2413
        %2517 = vmatprep.subr.bf16.mxu0 0
        %2518 = vmatpush2.bf16.msra.mxu0 0
        %2519 = vmatprep.subr.bf16.mxu0 0
        %2520 = vmatpush2.bf16.msra.mxu0 0
        %2521 = vmatprep.subr.bf16.mxu0 0
        %2522 = vmatpush2.bf16.msra.mxu0 0
        %2523 = vmatprep.subr.bf16.mxu0 0
        %2524 = vmatpush2.bf16.msra.mxu0 0
        %2525 = vmatprep.subr.bf16.mxu0 0
        %2526 = vmatpush2.bf16.msra.mxu0 0
        %2527 = vmatprep.subr.bf16.mxu0 0
        %2528 = vmatpush2.bf16.msra.mxu0 0
        %2529 = vmatprep.subr.bf16.mxu0 0
        %2530 = vmatpush2.bf16.msra.mxu0 0
        %2531 = vmatprep.subr.bf16.mxu0 0
        %2532 = vmatpush2.bf16.msra.mxu0 0
        %2533 = vmatprep.mubr.bf16.mxu0 0
        %2534 = vmatmul.mubr.bf16.gmra.mxu0 %v2490
        %v2535 = vpop.f32.mrf.mxu0
        %v2536 = vadd.f32 %v2432, %v2535
        %v2537 = vpop.f32.mrf.mxu0
        %v2538 = vadd.f32 %v2432, %v2537
        %v2539 = vpop.f32.mrf.mxu0
        %v2540 = vadd.f32 %v2437, %v2539
        %v2541 = vpop.f32.mrf.mxu0
        %v2542 = vadd.f32 %v2437, %v2541
        %2543 = vmatprep.mubr.bf16.mxu0 0
        %2544 = vmatmul.mubr.bf16.gmra.mxu0 %v2493
        %v2545 = vpop.f32.mrf.mxu0
        %v2546 = vadd.f32 %v2442, %v2545
        %v2547 = vpop.f32.mrf.mxu0
        %v2548 = vadd.f32 %v2442, %v2547
        %v2549 = vpop.f32.mrf.mxu0
        %v2550 = vadd.f32 %v2447, %v2549
        %v2551 = vpop.f32.mrf.mxu0
        %v2552 = vadd.f32 %v2447, %v2551
        %2553 = vmatprep.mubr.bf16.mxu0 0
        %2554 = vmatmul.mubr.bf16.gmra.mxu0 %v2496
        %v2555 = vpop.f32.mrf.mxu0
        %v2556 = vadd.f32 %v2452, %v2555
        %v2557 = vpop.f32.mrf.mxu0
        %v2558 = vadd.f32 %v2452, %v2557
        %v2559 = vpop.f32.mrf.mxu0
        %v2560 = vadd.f32 %v2457, %v2559
        %v2561 = vpop.f32.mrf.mxu0
        %v2562 = vadd.f32 %v2457, %v2561
        %2563 = vmatprep.mubr.bf16.mxu0 0
        %2564 = vmatmul.mubr.bf16.gmra.mxu0 %v2499
        %v2565 = vpop.f32.mrf.mxu0
        %v2566 = vadd.f32 %v2462, %v2565
        %v2567 = vpop.f32.mrf.mxu0
        %v2568 = vadd.f32 %v2462, %v2567
        %v2569 = vpop.f32.mrf.mxu0
        %v2570 = vadd.f32 %v2467, %v2569
        %v2571 = vpop.f32.mrf.mxu0
        %v2572 = vadd.f32 %v2467, %v2571
        %2573 = vdwg.mxu0
        %v2574 = vadd.f32 %v2536, %v332
        %v2575 = vadd.f32 %v2538, %v333
        %v2576 = vadd.f32 %v2540, %v334
        %v2577 = vadd.f32 %v2542, %v335
        %v2578 = vadd.f32 %v2546, %v336
        %v2579 = vadd.f32 %v2548, %v337
        %v2580 = vadd.f32 %v2550, %v338
        %v2581 = vadd.f32 %v2552, %v339
        %v2582 = vadd.f32 %v2556, %v340
        %v2583 = vadd.f32 %v2558, %v341
        %v2584 = vadd.f32 %v2560, %v342
        %v2585 = vadd.f32 %v2562, %v343
        %v2586 = vadd.f32 %v2566, %v344
        %v2587 = vadd.f32 %v2568, %v345
        %v2588 = vadd.f32 %v2570, %v346
        %v2589 = vadd.f32 %v2572, %v347
        %2590 = vst [vmem:[%s325] sm:$0xff] %v2574
        %2591 = vst [vmem:[%s325 + $0x8] sm:$0xff] %v2575
        %2592 = vst [vmem:[%s325 + $0x10] sm:$0xff] %v2576
        %2593 = vst [vmem:[%s325 + $0x18] sm:$0xff] %v2577
        %2594 = vst [vmem:[%s325 + $0x20] sm:$0xff] %v2578
        %2595 = vst [vmem:[%s325 + $0x28] sm:$0xff] %v2579
        %2596 = vst [vmem:[%s325 + $0x30] sm:$0xff] %v2580
        %2597 = vst [vmem:[%s325 + $0x38] sm:$0xff] %v2581
        %2598 = vst [vmem:[%s325 + $0x40] sm:$0xff] %v2582
        %2599 = vst [vmem:[%s325 + $0x48] sm:$0xff] %v2583
        %2600 = vst [vmem:[%s325 + $0x50] sm:$0xff] %v2584
        %2601 = vst [vmem:[%s325 + $0x58] sm:$0xff] %v2585
        %2602 = vst [vmem:[%s325 + $0x60] sm:$0xff] %v2586
        %2603 = vst [vmem:[%s325 + $0x68] sm:$0xff] %v2587
        %2604 = vst [vmem:[%s325 + $0x70] sm:$0xff] %v2588
        %2605 = vst [vmem:[%s325 + $0x78] sm:$0xff] %v2589
        %s2606 = sand.u32 %s225, 1
        %s2607 = scalar_lea.sflag [#allocation3], %s2606
        %s2608 = sand.u32 %s225, 1
        %s2609 = smul.addr %s2608, 128
        %s2610 = scalar_lea.vmem [#allocation2], %s2609
        // Predicated region
        $region57: #{tpu_custom_call.1} parent=55 // pred_check
          %p2611 = pneg %p235
        $region58: #{tpu_custom_call.1} parent=55 // pred_check_branch
          %2613 = sbr.rel (%p2611) target = $region60
        $region59: #{tpu_custom_call.1} parent=55 // pred_region
          %s2615 = ssub.s32 2048, 2048
          %2616 = vsyncadd %s2607, %s2615
          %s2617 = smul.addr %s23, 16
          %s2618 = smul.addr %s2617, 128
          %s2619 = scalar_lea.hbm %s9, %s2618
          %s2620 = sshll.u32 %s2610, 4
          %s2621 = int_to_ptr.vmem [resolvable:$true] %s2620
          %2626 = dma.vmem_to_hbm [thread:$0]  %s2621, 2048, %s2619, %s2607, 256, 256, 16
        $region60: #{tpu_custom_call.1} parent=55 // pred_fallthru
          _
      $region56: #{tpu_custom_call.1} parent=5 // pred_fallthru
        _
      %p2627 = scmp.le.s32.totalorder 2, %s18
      // Predicated region
      $region61: #{tpu_custom_call.1} parent=5 // pred_check
        %p2628 = pneg %p2627
      $region62: #{tpu_custom_call.1} parent=5 // pred_check_branch
        %2630 = sbr.rel (%p2628) target = $region64
      $region63: #{tpu_custom_call.1} parent=5 // pred_region
        %s2631 = ssub.s32 %s18, 2
        // Predicated region
        $region65: #{tpu_custom_call.1} parent=63 // pred_check
          %p2632 = pneg %p241
        $region66: #{tpu_custom_call.1} parent=63 // pred_check_branch
          %2634 = sbr.rel (%p2632) target = $region68
        $region67: #{tpu_custom_call.1} parent=63 // pred_region
          %s2635 = sand.u32 %s226, 1
          %s2636 = scalar_lea.sflag [#allocation3], %s2635
          %s2637 = sand.u32 %s226, 1
          %s2638 = smul.addr %s2637, 128
          %s2639 = scalar_lea.vmem [#allocation2], %s2638
          %2640 = dma.done %s2636, 2048
        $region68: #{tpu_custom_call.1} parent=63 // pred_fallthru
          _
      $region64: #{tpu_custom_call.1} parent=5 // pred_fallthru
        _
    $region6: #{tpu_custom_call.1} parent=1 // loop_footer
      %s22 = sadd.s32 1, %s18
    $region7: #{tpu_custom_call.1} parent=1 // loop_footer_branch
      %17 = sbr.rel target = $region3
    $region8: #{tpu_custom_call.1} parent=1 // loop_exit
      _
    %2641 = vsyncpa [#allocation3], 1
    %s2642 = scalar_lea.sflag [#allocation3], 1
    %2643 = vsyncpa %s2642, 1

</llo_original>
